<compile_context>
chip_gen: v7x
topology: tpu7x:2x2x1
jax: 0.10.0
libtpu: 0.0.40
codegen_flags: <defaults>
</compile_context>

<pallas_src>
import jax
import jax.numpy as jnp
from jax import lax
from jax.experimental import pallas as pl
from jax.experimental.pallas import tpu as pltpu

# RBF bandwidth multipliers from the PyTorch module's __init__ (deterministic).
_BANDWIDTH_MULTIPLIERS = (0.1, 0.5, 1.0, 1.5, 2.0)


def _make_mmd_kernel(tile):
    """Build the per-(row_tile, col_tile) kernel for a given static tile size."""

    def kernel(row_id_ref, col_id_ref, valid_ref,            # scalar prefetch (SMEM)
               zr_ref, zc_ref, sqr_ref, wr_ref,               # tiled operands
               sqc_ref, wc_ref,                               # resident (1, n_pad) vectors
               out_ref, acc_ref):
        p = pl.program_id(0)            # parallel slice (megacore on v7x)
        t = pl.program_id(1)            # step within this slice's tile schedule

        @pl.when(t == 0)
        def _init():
            acc_ref[...] = jnp.zeros_like(acc_ref)

        # Column-side scaled norms / sign weights: slice the resident vectors.
        c0 = pl.multiple_of(col_id_ref[p, t] * tile, 128)
        sq_c = sqc_ref[:, pl.ds(c0, tile)]                    # (1, tile)
        w_c = wc_ref[:, pl.ds(c0, tile)]                      # (1, tile)

        zr = zr_ref[...]                                      # (tile, D), pre-scaled by sqrt(1/(6*bw))
        zc = zc_ref[...]                                      # (tile, D)

        # scaled squared distances:  L2/(6*bw) = sq_r + sq_c - 2 * zr . zc^T   (MXU)
        gram = lax.dot_general(zr, zc, (((1,), (1,)), ((), ())),
                               preferred_element_type=jnp.float32)   # (tile, tile)
        l2 = jnp.maximum(sqr_ref[...] + sq_c - 2.0 * gram, 0.0)

        # One EUP exp; the five RBF kernels are exact integer powers of u:
        #   exp(-L2/(bw*m)) for m in (0.1,0.5,1.0,1.5,2.0)  ==  u^{60,12,6,4,3}
        u = jnp.exp(-l2)
        u2 = u * u
        u3 = u2 * u
        u4 = u2 * u2
        u6 = u3 * u3
        u12 = u6 * u6
        u24 = u12 * u12
        u48 = u24 * u24
        u60 = u48 * u12
        k = u3 + u4 + u6 + u12 + u60

        # Per-tile scale: 0 for schedule-padding tiles, 1 on the diagonal,
        # 2 for off-diagonal tiles (upper triangle visited once, K symmetric).
        same = row_id_ref[p, t] == col_id_ref[p, t]
        scale = jnp.where(valid_ref[p, t] == 0, jnp.float32(0.0),
                          jnp.where(same, jnp.float32(1.0), jnp.float32(2.0)))

        # Sign-weighted accumulation into a VMEM (tile,tile) accumulator: pure VPU adds.
        acc_ref[...] += k * ((wr_ref[...] * scale) * w_c)

        # Single cross-lane reduction + scalar store per parallel slice.
        @pl.when(t == pl.num_programs(1) - 1)
        def _final():
            out_ref[...] = jnp.sum(acc_ref[...]).reshape(1, 1, 1)

    return kernel


def mmd_loss(X, Y, *, tile=None, mxu_dtype=jnp.float32):
    """MMDLoss.forward(X, Y) — X: (Nx, D), Y: (Ny, D). Returns scalar f32."""
    X = jnp.asarray(X, jnp.float32)
    Y = jnp.asarray(Y, jnp.float32)
    nx, ny = X.shape[0], Y.shape[0]
    Z = jnp.concatenate([X, Y], axis=0)                # torch.vstack
    n, d = Z.shape

    # --- D-aware / problem-size-aware tile selection (v7x has only 64 MiB VMEM) -----
    if tile is None:
        if d >= 8192:
            tile = 128
        elif d > 256:
            tile = 256
        else:
            tile = 512
        n_ceil = ((n + 127) // 128) * 128
        while tile > 128 and tile >= 2 * n_ceil:       # don't tile far past the problem
            tile //= 2

    # --- O(n*D) prologue (plain-JAX glue) --------------------------------------------
    sq = jnp.sum(Z * Z, axis=-1)                       # (n,)
    col_sum = jnp.sum(Z, axis=0)                       # (d,)
    # sum_{i,j} ||z_i - z_j||^2 = 2n * sum||z_i||^2 - 2 * ||sum_i z_i||^2
    sum_l2 = 2.0 * n * jnp.sum(sq) - 2.0 * jnp.sum(col_sum * col_sum)
    bandwidth = sum_l2 / float(n * n - n)              # RBF.get_bandwidth(None)
    # NOTE: diverges from PyTorch on degenerate (all-identical) inputs, where torch
    # would produce NaN/Inf; we clamp instead (intentional).
    bandwidth = jnp.maximum(bandwidth, 1e-12)
    c = 1.0 / (6.0 * bandwidth)                        # kernel works on c*L2

    # sign weights: s^T K s == XX.mean() - 2*XY.mean() + YY.mean() (exact for Nx != Ny)
    w = jnp.concatenate([jnp.full((nx,), 1.0 / nx, jnp.float32),
                         jnp.full((ny,), -1.0 / ny, jnp.float32)])

    # pad samples to a multiple of `tile`; padded rows get weight 0 (no contribution,
    # and bandwidth was computed on unpadded data)
    n_pad = ((n + tile - 1) // tile) * tile
    pad = n_pad - n
    z_scaled = jnp.pad(Z * jnp.sqrt(c), ((0, pad), (0, 0))).astype(mxu_dtype)  # (n_pad, d)
    sq_scaled = jnp.pad(sq * c, (0, pad))                                      # (n_pad,)
    w = jnp.pad(w, (0, pad))

    sq_row = sq_scaled.reshape(n_pad, 1)               # tiled per row-block
    w_row = w.reshape(n_pad, 1)
    sq_full = sq_scaled.reshape(1, n_pad)              # resident in VMEM (fetched once)
    w_full = w.reshape(1, n_pad)

    # --- upper-triangular tile schedule, round-robin split into 2 parallel slices ----
    nt = n_pad // tile
    pairs = [(i, j) for i in range(nt) for j in range(i, nt)]
    valid = [1] * len(pairs)
    if len(pairs) % 2:                                 # pad schedule to an even length
        pairs.append((0, 0))
        valid.append(0)
    rows = [ij[0] for ij in pairs]
    cols = [ij[1] for ij in pairs]
    row_ids = jnp.asarray([rows[0::2], rows[1::2]], jnp.int32)     # (2, steps)
    col_ids = jnp.asarray([cols[0::2], cols[1::2]], jnp.int32)
    valid_ids = jnp.asarray([valid[0::2], valid[1::2]], jnp.int32)
    steps = row_ids.shape[1]

    # --- VMEM budget from the actual footprint (portable across v5e/v6e/v7x) ---------
    elem = jnp.dtype(mxu_dtype).itemsize
    vmem_est = (4 * tile * d * elem          # Z row + Z col, double-buffered
                + 4 * tile * 128 * 4         # (tile,1) row-side vectors (lane-padded)
                + 4 * 8 * n_pad * 4          # resident (1,n_pad) vectors (sublane-padded)
                + 12 * tile * tile * 4       # acc scratch + elementwise temporaries
                + (2 << 20))                 # slack
    vmem_limit = int(min(max(vmem_est, 32 << 20), 64 << 20))

    grid_spec = pltpu.PrefetchScalarGridSpec(
        num_scalar_prefetch=3,
        grid=(2, steps),
        in_specs=[
            pl.BlockSpec((tile, d), lambda p, t, ri, ci, va: (ri[p, t], 0)),   # Z row tile
            pl.BlockSpec((tile, d), lambda p, t, ri, ci, va: (ci[p, t], 0)),   # Z col tile
            pl.BlockSpec((tile, 1), lambda p, t, ri, ci, va: (ri[p, t], 0)),   # row norms
            pl.BlockSpec((tile, 1), lambda p, t, ri, ci, va: (ri[p, t], 0)),   # row weights
            pl.BlockSpec((1, n_pad), lambda p, t, ri, ci, va: (0, 0)),         # col norms (resident)
            pl.BlockSpec((1, n_pad), lambda p, t, ri, ci, va: (0, 0)),         # col weights (resident)
        ],
        out_specs=pl.BlockSpec((1, 1, 1), lambda p, t, ri, ci, va: (p, 0, 0)), # per-slice partial
        scratch_shapes=[pltpu.VMEM((tile, tile), jnp.float32)],                # accumulator
    )

    out = pl.pallas_call(
        _make_mmd_kernel(tile),
        out_shape=jax.ShapeDtypeStruct((2, 1, 1), jnp.float32),
        grid_spec=grid_spec,
        compiler_params=pltpu.CompilerParams(
            dimension_semantics=("parallel", "arbitrary"),   # megacore split on v7x
            vmem_limit_bytes=vmem_limit,
        ),
    )(row_ids, col_ids, valid_ids, z_scaled, z_scaled,
      sq_row, w_row, sq_full, w_full)

    return jnp.sum(out)                                # combine the two per-core partials


def _mmd_ref(X, Y):
    """Pure-JAX reference matching the PyTorch module (5 direct exps, summed bandwidth)."""
    Z = jnp.concatenate([X, Y], axis=0).astype(jnp.float32)
    n = Z.shape[0]
    x_size = X.shape[0]
    sq = jnp.sum(Z * Z, axis=-1, keepdims=True)
    l2 = jnp.maximum(sq + sq.T - 2.0 * Z @ Z.T, 0.0)
    bw = jnp.sum(l2) / (n * n - n)
    k = sum(jnp.exp(-l2 / (bw * m)) for m in _BANDWIDTH_MULTIPLIERS)
    xx = jnp.mean(k[:x_size, :x_size])
    xy = jnp.mean(k[:x_size, x_size:])
    yy = jnp.mean(k[x_size:, x_size:])
    return xx - 2.0 * xy + yy


if __name__ == "__main__":
    key = jax.random.PRNGKey(0)
    kx, ky = jax.random.split(key)

    # Small case (matches the module's typical toy usage).
    N, D = 8, 32
    X = jax.random.normal(kx, (N, D), dtype=jnp.float32)
    Y = jax.random.normal(ky, (N, D), dtype=jnp.float32) + 0.5
    loss = jax.block_until_ready(mmd_loss(X, Y))
    ref = jax.block_until_ready(_mmd_ref(X, Y))
    assert jnp.isfinite(loss), "non-finite loss"
    assert abs(float(loss) - float(ref)) < 1e-4, (float(loss), float(ref))

    # Multi-tile path (Nx != Ny, off-diagonal doubling, schedule padding, resident-vector
    # slicing with non-zero offsets) — force tile=128 so several tiles are produced.
    N2x, N2y, D2 = 96, 160, 64
    X2 = jax.random.normal(kx, (N2x, D2), dtype=jnp.float32)
    Y2 = jax.random.normal(ky, (N2y, D2), dtype=jnp.float32) * 1.3 + 0.25
    loss2 = jax.block_until_ready(mmd_loss(X2, Y2, tile=128))
    ref2 = jax.block_until_ready(_mmd_ref(X2, Y2))
    assert jnp.isfinite(loss2), "non-finite loss (multi-tile)"
    assert abs(float(loss2) - float(ref2)) < 2e-4, (float(loss2), float(ref2))

    print("KERNEL_OK")
</pallas_src>

<mosaic_0001>
module attributes {stable_mosaic.version = 11 : i64} {
  func.func @kernel(%arg0: i32, %arg1: i32, %arg2: memref<2x1xi32, #tpu.memory_space<smem>>, %arg3: memref<2x1xi32, #tpu.memory_space<smem>>, %arg4: memref<2x1xi32, #tpu.memory_space<smem>>, %arg5: memref<128x32xf32, #tpu.memory_space<vmem>>, %arg6: memref<128x32xf32, #tpu.memory_space<vmem>>, %arg7: memref<128x1xf32, #tpu.memory_space<vmem>>, %arg8: memref<128x1xf32, #tpu.memory_space<vmem>>, %arg9: memref<1x128xf32, #tpu.memory_space<vmem>>, %arg10: memref<1x128xf32, #tpu.memory_space<vmem>>, %arg11: memref<1x1x1xf32, #tpu.memory_space<vmem>>, %arg12: memref<128x128xf32, #tpu.memory_space<vmem>>) attributes {dimension_semantics = [#tpu.dimension_semantics<parallel>, #tpu.dimension_semantics<arbitrary>], iteration_bounds = array<i64: 2, 1>, scalar_prefetch = 3 : i64, scratch_operands = 1 : i64, tpu.core_type = #tpu.core_type<tc>, window_params = [{transform_indices = @transform_0, window_bounds = array<i64: 128, 32>}, {transform_indices = @transform_1, window_bounds = array<i64: 128, 32>}, {transform_indices = @transform_2, window_bounds = array<i64: 128, 1>}, {transform_indices = @transform_3, window_bounds = array<i64: 128, 1>}, {pipeline_mode = #tpu.pipeline_mode<synchronous>, transform_indices = @transform_4, window_bounds = array<i64: 1, 128>}, {pipeline_mode = #tpu.pipeline_mode<synchronous>, transform_indices = @transform_5, window_bounds = array<i64: 1, 128>}, {transform_indices = @transform_6, window_bounds = array<i64: 1, 1, 1>}]} {
    %c0_i32 = arith.constant 0 : i32
    %0 = arith.cmpi eq, %arg1, %c0_i32 : i32
    %1 = arith.extui %0 : i1 to i32
    %c0_i32_0 = arith.constant 0 : i32
    %2 = arith.cmpi ne, %1, %c0_i32_0 : i32
    scf.if %2 {
      %cst_23 = arith.constant 0.000000e+00 : f32
      %65 = vector.broadcast %cst_23 : f32 to vector<128x128xf32>
      %c0_24 = arith.constant 0 : index
      %c0_25 = arith.constant 0 : index
      %66 = vector.load %arg12[%c0_24, %c0_25] : memref<128x128xf32, #tpu.memory_space<vmem>>, vector<128x128xf32>
      tpu.vector_store %arg12[%c0_24, %c0_25], %65 {strides = array<i32>} : memref<128x128xf32, #tpu.memory_space<vmem>>, vector<128x128xf32>,
    } else {
    }
    %3 = arith.index_cast %arg0 : i32 to index
    %4 = arith.index_cast %arg1 : i32 to index
    %5 = memref.load %arg3[%3, %4] : memref<2x1xi32, #tpu.memory_space<smem>>
    %c128_i32 = arith.constant 128 : i32
    %6 = arith.muli %5, %c128_i32 : i32
    %7 = tpu.assume_multiple %6, 128 : i32
    %c0 = arith.constant 0 : index
    %8 = arith.index_cast %7 : i32 to index
    %9 = vector.load %arg9[%c0, %8] : memref<1x128xf32, #tpu.memory_space<vmem>>, vector<1x128xf32>
    %c0_1 = arith.constant 0 : index
    %10 = arith.index_cast %7 : i32 to index
    %11 = vector.load %arg10[%c0_1, %10] : memref<1x128xf32, #tpu.memory_space<vmem>>, vector<1x128xf32>
    %c0_2 = arith.constant 0 : index
    %c0_3 = arith.constant 0 : index
    %12 = vector.load %arg5[%c0_2, %c0_3] : memref<128x32xf32, #tpu.memory_space<vmem>>, vector<128x32xf32>
    %c0_4 = arith.constant 0 : index
    %c0_5 = arith.constant 0 : index
    %13 = vector.load %arg6[%c0_4, %c0_5] : memref<128x32xf32, #tpu.memory_space<vmem>>, vector<128x32xf32>
    %cst = arith.constant dense<0.000000e+00> : vector<128x128xf32>
    %14 = tpu.matmul %12, %13, %cst {dimension_numbers = #tpu.dot_dimension_numbers<[1], [1], [0], [0], [0, 0, 1, 0], [], []>} : vector<128x32xf32>, vector<128x32xf32>, vector<128x128xf32> -> vector<128x128xf32>
    %c0_6 = arith.constant 0 : index
    %c0_7 = arith.constant 0 : index
    %15 = vector.load %arg7[%c0_6, %c0_7] : memref<128x1xf32, #tpu.memory_space<vmem>>, vector<128x1xf32>
    %16 = vector.broadcast %15 : vector<128x1xf32> to vector<128x128xf32>
    %17 = vector.broadcast %9 : vector<1x128xf32> to vector<128x128xf32>
    %18 = arith.addf %16, %17 : vector<128x128xf32>
    %cst_8 = arith.constant 2.000000e+00 : f32
    %19 = vector.broadcast %cst_8 : f32 to vector<128x128xf32>
    %20 = arith.mulf %19, %14 : vector<128x128xf32>
    %21 = arith.subf %18, %20 : vector<128x128xf32>
    %cst_9 = arith.constant 0.000000e+00 : f32
    %22 = vector.broadcast %cst_9 : f32 to vector<128x128xf32>
    %23 = arith.maximumf %21, %22 : vector<128x128xf32>
    %cst_10 = arith.constant 0.000000e+00 : f32
    %24 = vector.broadcast %cst_10 : f32 to vector<128x128xf32>
    %25 = arith.subf %24, %23 : vector<128x128xf32>
    %26 = math.exp %25 : vector<128x128xf32>
    %27 = arith.mulf %26, %26 : vector<128x128xf32>
    %28 = arith.mulf %27, %26 : vector<128x128xf32>
    %29 = arith.mulf %27, %27 : vector<128x128xf32>
    %30 = arith.mulf %28, %28 : vector<128x128xf32>
    %31 = arith.mulf %30, %30 : vector<128x128xf32>
    %32 = arith.mulf %31, %31 : vector<128x128xf32>
    %33 = arith.mulf %32, %32 : vector<128x128xf32>
    %34 = arith.mulf %33, %31 : vector<128x128xf32>
    %35 = arith.addf %28, %29 : vector<128x128xf32>
    %36 = arith.addf %35, %30 : vector<128x128xf32>
    %37 = arith.addf %36, %31 : vector<128x128xf32>
    %38 = arith.addf %37, %34 : vector<128x128xf32>
    %39 = arith.index_cast %arg0 : i32 to index
    %40 = arith.index_cast %arg1 : i32 to index
    %41 = memref.load %arg2[%39, %40] : memref<2x1xi32, #tpu.memory_space<smem>>
    %42 = arith.index_cast %arg0 : i32 to index
    %43 = arith.index_cast %arg1 : i32 to index
    %44 = memref.load %arg3[%42, %43] : memref<2x1xi32, #tpu.memory_space<smem>>
    %45 = arith.cmpi eq, %41, %44 : i32
    %46 = arith.index_cast %arg0 : i32 to index
    %47 = arith.index_cast %arg1 : i32 to index
    %48 = memref.load %arg4[%46, %47] : memref<2x1xi32, #tpu.memory_space<smem>>
    %c0_i32_11 = arith.constant 0 : i32
    %49 = arith.cmpi eq, %48, %c0_i32_11 : i32
    %cst_12 = arith.constant 1.000000e+00 : f32
    %cst_13 = arith.constant 2.000000e+00 : f32
    %50 = arith.select %45, %cst_12, %cst_13 : f32
    %cst_14 = arith.constant 0.000000e+00 : f32
    %51 = arith.select %49, %cst_14, %50 : f32
    %c0_15 = arith.constant 0 : index
    %c0_16 = arith.constant 0 : index
    %52 = vector.load %arg12[%c0_15, %c0_16] : memref<128x128xf32, #tpu.memory_space<vmem>>, vector<128x128xf32>
    %c0_17 = arith.constant 0 : index
    %c0_18 = arith.constant 0 : index
    %53 = vector.load %arg8[%c0_17, %c0_18] : memref<128x1xf32, #tpu.memory_space<vmem>>, vector<128x1xf32>
    %54 = vector.broadcast %51 : f32 to vector<128x1xf32>
    %55 = arith.mulf %53, %54 : vector<128x1xf32>
    %56 = vector.broadcast %55 : vector<128x1xf32> to vector<128x128xf32>
    %57 = vector.broadcast %11 : vector<1x128xf32> to vector<128x128xf32>
    %58 = arith.mulf %56, %57 : vector<128x128xf32>
    %59 = arith.mulf %38, %58 : vector<128x128xf32>
    %60 = arith.addf %52, %59 : vector<128x128xf32>
    %c0_19 = arith.constant 0 : index
    %c0_20 = arith.constant 0 : index
    %61 = vector.load %arg12[%c0_19, %c0_20] : memref<128x128xf32, #tpu.memory_space<vmem>>, vector<128x128xf32>
    tpu.vector_store %arg12[%c0_19, %c0_20], %60 {strides = array<i32>} : memref<128x128xf32, #tpu.memory_space<vmem>>, vector<128x128xf32>,
    %c0_i32_21 = arith.constant 0 : i32
    %62 = arith.cmpi eq, %arg1, %c0_i32_21 : i32
    %63 = arith.extui %62 : i1 to i32
    %c0_i32_22 = arith.constant 0 : i32
    %64 = arith.cmpi ne, %63, %c0_i32_22 : i32
    scf.if %64 {
      %c0_23 = arith.constant 0 : index
      %c0_24 = arith.constant 0 : index
      %65 = vector.load %arg12[%c0_23, %c0_24] : memref<128x128xf32, #tpu.memory_space<vmem>>, vector<128x128xf32>
      %66 = vector.shape_cast %65 : vector<128x128xf32> to vector<1x128x128xf32>
      %cst_25 = arith.constant dense<0.000000e+00> : vector<1xf32>
      %67 = vector.multi_reduction <add>, %66, %cst_25 [1, 2] : vector<1x128x128xf32> to vector<1xf32>
      %68 = vector.shape_cast %67 : vector<1xf32> to vector<1x1x1xf32>
      %69 = vector.extract %68[0, 0, 0] : f32 from vector<1x1x1xf32>
      %70 = vector.broadcast %69 : f32 to vector<1x1x1xf32>
      %c0_26 = arith.constant 0 : index
      %c0_27 = arith.constant 0 : index
      %c0_28 = arith.constant 0 : index
      %71 = vector.load %arg11[%c0_26, %c0_27, %c0_28] : memref<1x1x1xf32, #tpu.memory_space<vmem>>, vector<1x1x1xf32>
      tpu.vector_store %arg11[%c0_26, %c0_27, %c0_28], %70 {strides = array<i32>} : memref<1x1x1xf32, #tpu.memory_space<vmem>>, vector<1x1x1xf32>,
    } else {
    }
    return
  }
  func.func @transform_0(%arg0: i32, %arg1: i32, %arg2: memref<2x1xi32, #tpu.memory_space<smem>>, %arg3: memref<2x1xi32, #tpu.memory_space<smem>>, %arg4: memref<2x1xi32, #tpu.memory_space<smem>>) -> (i32, i32) {
    %0 = arith.index_cast %arg0 : i32 to index
    %1 = arith.index_cast %arg1 : i32 to index
    %2 = memref.load %arg2[%0, %1] : memref<2x1xi32, #tpu.memory_space<smem>>
    %c0_i32 = arith.constant 0 : i32
    %c0_i32_0 = arith.constant 0 : i32
    return %2, %c0_i32 : i32, i32
  }
  func.func @transform_1(%arg0: i32, %arg1: i32, %arg2: memref<2x1xi32, #tpu.memory_space<smem>>, %arg3: memref<2x1xi32, #tpu.memory_space<smem>>, %arg4: memref<2x1xi32, #tpu.memory_space<smem>>) -> (i32, i32) {
    %0 = arith.index_cast %arg0 : i32 to index
    %1 = arith.index_cast %arg1 : i32 to index
    %2 = memref.load %arg3[%0, %1] : memref<2x1xi32, #tpu.memory_space<smem>>
    %c0_i32 = arith.constant 0 : i32
    %c0_i32_0 = arith.constant 0 : i32
    return %2, %c0_i32 : i32, i32
  }
  func.func @transform_2(%arg0: i32, %arg1: i32, %arg2: memref<2x1xi32, #tpu.memory_space<smem>>, %arg3: memref<2x1xi32, #tpu.memory_space<smem>>, %arg4: memref<2x1xi32, #tpu.memory_space<smem>>) -> (i32, i32) {
    %0 = arith.index_cast %arg0 : i32 to index
    %1 = arith.index_cast %arg1 : i32 to index
    %2 = memref.load %arg2[%0, %1] : memref<2x1xi32, #tpu.memory_space<smem>>
    %c0_i32 = arith.constant 0 : i32
    %c0_i32_0 = arith.constant 0 : i32
    return %2, %c0_i32 : i32, i32
  }
  func.func @transform_3(%arg0: i32, %arg1: i32, %arg2: memref<2x1xi32, #tpu.memory_space<smem>>, %arg3: memref<2x1xi32, #tpu.memory_space<smem>>, %arg4: memref<2x1xi32, #tpu.memory_space<smem>>) -> (i32, i32) {
    %0 = arith.index_cast %arg0 : i32 to index
    %1 = arith.index_cast %arg1 : i32 to index
    %2 = memref.load %arg2[%0, %1] : memref<2x1xi32, #tpu.memory_space<smem>>
    %c0_i32 = arith.constant 0 : i32
    %c0_i32_0 = arith.constant 0 : i32
    return %2, %c0_i32 : i32, i32
  }
  func.func @transform_4(%arg0: i32, %arg1: i32, %arg2: memref<2x1xi32, #tpu.memory_space<smem>>, %arg3: memref<2x1xi32, #tpu.memory_space<smem>>, %arg4: memref<2x1xi32, #tpu.memory_space<smem>>) -> (i32, i32) {
    %c0_i32 = arith.constant 0 : i32
    %c0_i32_0 = arith.constant 0 : i32
    %c0_i32_1 = arith.constant 0 : i32
    return %c0_i32, %c0_i32_0 : i32, i32
  }
  func.func @transform_5(%arg0: i32, %arg1: i32, %arg2: memref<2x1xi32, #tpu.memory_space<smem>>, %arg3: memref<2x1xi32, #tpu.memory_space<smem>>, %arg4: memref<2x1xi32, #tpu.memory_space<smem>>) -> (i32, i32) {
    %c0_i32 = arith.constant 0 : i32
    %c0_i32_0 = arith.constant 0 : i32
    %c0_i32_1 = arith.constant 0 : i32
    return %c0_i32, %c0_i32_0 : i32, i32
  }
  func.func @transform_6(%arg0: i32, %arg1: i32, %arg2: memref<2x1xi32, #tpu.memory_space<smem>>, %arg3: memref<2x1xi32, #tpu.memory_space<smem>>, %arg4: memref<2x1xi32, #tpu.memory_space<smem>>) -> (i32, i32, i32) {
    %c0_i32 = arith.constant 0 : i32
    %c0_i32_0 = arith.constant 0 : i32
    %c0_i32_1 = arith.constant 0 : i32
    return %arg0, %c0_i32, %c0_i32_0 : i32, i32, i32
  }
}

</mosaic_0001>

<llo_original>
// kernel: tpu_custom_call.1
$region0: #{tpu_custom_call.1}
  #allocation0 [shape = 'u32[]', space=smem, size = 0x4, offset = 0x4, fixed_abs, tag = 'smem constant byte address 0x4 - core index']
  #allocation1 [shape = 'u32[144,128]{1,0:T(1,128)}', space=vmem, size = 0x12000, scoped, tag = 'internal scratch']
  #allocation2 [shape = 'f32[128,128]{1,0:T(8,128)}', space=vmem, size = 0x10000, scoped, tag = 'scratch operand']
  #allocation3 [shape = 's32[1]{0}', space=sflag, size = 0x4, scoped, tag = 'scoped memory for tpu_custom_call.1']
  #allocation4 [shape = 'u8[1024]{0}', space=smem, size = 0x400, scoped, tag = 'prefetched SMEM operand 0']
  #allocation5 [shape = 'u8[1024]{0}', space=smem, size = 0x400, scoped, tag = 'prefetched SMEM operand 1']
  #allocation6 [shape = 'u8[1024]{0}', space=smem, size = 0x400, scoped, tag = 'prefetched SMEM operand 2']
  %s0 = inlined_call_operand.vmem [shape: s32[2,1], index: 0, kind: input, shape index: {}]
  %s1 = inlined_call_operand.vmem [shape: s32[2,1], index: 1, kind: input, shape index: {}]
  %s2 = inlined_call_operand.vmem [shape: s32[2,1], index: 2, kind: input, shape index: {}]
  %s3 = inlined_call_operand.vmem [shape: f32[128,32], index: 3, kind: input, shape index: {}]
  %s4 = inlined_call_operand.vmem [shape: f32[128,32], index: 4, kind: input, shape index: {}]
  %s5 = inlined_call_operand.vmem [shape: f32[128,1], index: 5, kind: input, shape index: {}]
  %s6 = inlined_call_operand.vmem [shape: f32[128,1], index: 6, kind: input, shape index: {}]
  %s7 = inlined_call_operand.vmem [shape: f32[1,128], index: 7, kind: input, shape index: {}]
  %s8 = inlined_call_operand.vmem [shape: f32[1,128], index: 8, kind: input, shape index: {}]
  %s9 = inlined_call_operand.vmem [shape: f32[2,1,1], index: 9, kind: output, shape index: {}]
  %s10 = sld [smem:[#allocation0]]
  $region65: #{tpu_custom_call.1} parent=0
    _
  %s12 = ssub.s32 1, %s10
  %s13 = scalar_select 0, %s12, %s10
  %s14 = sshll.u32 %s0, 4
  %s15 = int_to_ptr.vmem [resolvable:$true] %s14
  %17 = dma.vmem_to_smem %s15, 32, [#allocation4], [#allocation3]
  %s18 = sshll.u32 %s1, 4
  %s19 = int_to_ptr.vmem [resolvable:$true] %s18
  %21 = dma.vmem_to_smem %s19, 32, [#allocation5], [#allocation3]
  %s22 = sshll.u32 %s2, 4
  %s23 = int_to_ptr.vmem [resolvable:$true] %s22
  %25 = dma.vmem_to_smem %s23, 32, [#allocation6], [#allocation3]
  %26 = dma.done [#allocation3], 96
  %27 = sfence
  loop: start=0, step=1, limit=4
  $region2: #{tpu_custom_call.1} parent=0 // loop_pre_header
    _
  $region3: #{tpu_custom_call.1} parent=0 // loop_header
    %s29 = sphi 0, %s33
    %p30 = scmp.ge.s32.totalorder %s29, 4
    %s36 = sphi 0, %s48
    %s37 = sphi 0, %s44
    %s38 = sphi 0, %s36
    %s39 = sphi 0, %s37
    %s40 = sphi 0, %s38
    %s41 = sphi 0, %s39
    %s67 = sphi 0, %s69
    %s70 = sphi 0, %s67
    %s71 = sphi 0, %s70
    %s87 = sphi 0, %s71
    %s109 = sphi 0, %s111
    %s112 = sphi 0, %s109
    %s113 = sphi 0, %s112
    %s129 = sphi 0, %s113
    %s151 = sphi 0, %s153
    %s154 = sphi 0, %s151
    %s155 = sphi 0, %s154
    %s171 = sphi 0, %s155
    %s193 = sphi 0, %s195
    %s196 = sphi 0, %s193
    %s197 = sphi 0, %s196
    %s213 = sphi 0, %s197
    %s217 = sphi 0, %s217
    %s219 = sphi 0, %s217
    %s220 = sphi 0, %s219
    %s234 = sphi 0, %s220
    %s238 = sphi 0, %s238
    %s240 = sphi 0, %s238
    %s241 = sphi 0, %s240
    %s255 = sphi 0, %s241
    %s261 = sphi 0, %s263
    %s264 = sphi 0, %s261
    %s265 = sphi 0, %s264
    %s281 = sphi 0, %s265
  $region4: #{tpu_custom_call.1} parent=0 // loop_header_branch
    %32 = sbr.rel (%p30) target = $region8
  $region5: #{tpu_custom_call.1} parent=0 // loop_body
    %s34 = ssub.s32 %s29, 1
    %s35 = ssub.s32 %s29, 2
    %s42 = sadd.s32 1, %s37
    %p43 = scmp.ge.s32.totalorder %s42, 1
    %s44 = scalar_select %p43, 0, %s42
    %s45 = sadd.s32 1, %s36
    %s46 = scalar_select %p43, %s45, %s36
    %p47 = scmp.ge.s32.totalorder %s46, 2
    %s48 = scalar_select %p47, 0, %s46
    %s49 = sshra.s32 %s37, 7
    %s50 = sand.u32 %s37, 127
    %s51 = sadd.s32 %s49, %s36
    %s52 = smul.u32 %s51, 128
    %s53 = sshra.s32 %s37, 7
    %s54 = sand.u32 %s37, 127
    %s55 = sadd.s32 %s52, %s54
    %s56 = sld [smem:[#allocation4 + %s55]]
    %s57 = sshra.s32 %s44, 7
    %s58 = sand.u32 %s44, 127
    %s59 = sadd.s32 %s57, %s48
    %s60 = smul.u32 %s59, 128
    %s61 = sshra.s32 %s44, 7
    %s62 = sand.u32 %s44, 127
    %s63 = sadd.s32 %s60, %s62
    %s64 = sld [smem:[#allocation4 + %s63]]
    %s65 = ssub.s32 %s56, %s64
    %p66 = scmp.eq.s32.totalorder %s65, 0
    %s68 = sadd.s32 %s67, 1
    %s69 = scalar_select %p66, %s67, %s68
    %p72 = pneg %p66
    %p73 = scmp.eq.s32.totalorder %s29, 1
    %p74 = por %p72, %p73
    %p75 = scmp.ne.s32.totalorder %s67, %s70
    %p76 = scmp.eq.s32.totalorder %s29, 0
    %p77 = por %p75, %p76
    %p78 = scmp.ne.s32.totalorder %s67, %s70
    %p79 = scmp.eq.s32.totalorder %s34, 1
    %p80 = por %p78, %p79
    %p81 = scmp.ne.s32.totalorder %s70, %s71
    %p82 = scmp.eq.s32.totalorder %s34, 0
    %p83 = por %p81, %p82
    %p84 = scmp.ne.s32.totalorder %s70, %s71
    %p85 = scmp.eq.s32.totalorder %s35, 1
    %p86 = por %p84, %p85
    %p88 = scmp.ne.s32.totalorder %s71, %s87
    %p89 = scmp.eq.s32.totalorder %s35, 0
    %p90 = por %p88, %p89
    %s91 = sshra.s32 %s37, 7
    %s92 = sand.u32 %s37, 127
    %s93 = sadd.s32 %s91, %s36
    %s94 = smul.u32 %s93, 128
    %s95 = sshra.s32 %s37, 7
    %s96 = sand.u32 %s37, 127
    %s97 = sadd.s32 %s94, %s96
    %s98 = sld [smem:[#allocation5 + %s97]]
    %s99 = sshra.s32 %s44, 7
    %s100 = sand.u32 %s44, 127
    %s101 = sadd.s32 %s99, %s48
    %s102 = smul.u32 %s101, 128
    %s103 = sshra.s32 %s44, 7
    %s104 = sand.u32 %s44, 127
    %s105 = sadd.s32 %s102, %s104
    %s106 = sld [smem:[#allocation5 + %s105]]
    %s107 = ssub.s32 %s98, %s106
    %p108 = scmp.eq.s32.totalorder %s107, 0
    %s110 = sadd.s32 %s109, 1
    %s111 = scalar_select %p108, %s109, %s110
    %p114 = pneg %p108
    %p115 = scmp.eq.s32.totalorder %s29, 1
    %p116 = por %p114, %p115
    %p117 = scmp.ne.s32.totalorder %s109, %s112
    %p118 = scmp.eq.s32.totalorder %s29, 0
    %p119 = por %p117, %p118
    %p120 = scmp.ne.s32.totalorder %s109, %s112
    %p121 = scmp.eq.s32.totalorder %s34, 1
    %p122 = por %p120, %p121
    %p123 = scmp.ne.s32.totalorder %s112, %s113
    %p124 = scmp.eq.s32.totalorder %s34, 0
    %p125 = por %p123, %p124
    %p126 = scmp.ne.s32.totalorder %s112, %s113
    %p127 = scmp.eq.s32.totalorder %s35, 1
    %p128 = por %p126, %p127
    %p130 = scmp.ne.s32.totalorder %s113, %s129
    %p131 = scmp.eq.s32.totalorder %s35, 0
    %p132 = por %p130, %p131
    %s133 = sshra.s32 %s37, 7
    %s134 = sand.u32 %s37, 127
    %s135 = sadd.s32 %s133, %s36
    %s136 = smul.u32 %s135, 128
    %s137 = sshra.s32 %s37, 7
    %s138 = sand.u32 %s37, 127
    %s139 = sadd.s32 %s136, %s138
    %s140 = sld [smem:[#allocation4 + %s139]]
    %s141 = sshra.s32 %s44, 7
    %s142 = sand.u32 %s44, 127
    %s143 = sadd.s32 %s141, %s48
    %s144 = smul.u32 %s143, 128
    %s145 = sshra.s32 %s44, 7
    %s146 = sand.u32 %s44, 127
    %s147 = sadd.s32 %s144, %s146
    %s148 = sld [smem:[#allocation4 + %s147]]
    %s149 = ssub.s32 %s140, %s148
    %p150 = scmp.eq.s32.totalorder %s149, 0
    %s152 = sadd.s32 %s151, 1
    %s153 = scalar_select %p150, %s151, %s152
    %p156 = pneg %p150
    %p157 = scmp.eq.s32.totalorder %s29, 1
    %p158 = por %p156, %p157
    %p159 = scmp.ne.s32.totalorder %s151, %s154
    %p160 = scmp.eq.s32.totalorder %s29, 0
    %p161 = por %p159, %p160
    %p162 = scmp.ne.s32.totalorder %s151, %s154
    %p163 = scmp.eq.s32.totalorder %s34, 1
    %p164 = por %p162, %p163
    %p165 = scmp.ne.s32.totalorder %s154, %s155
    %p166 = scmp.eq.s32.totalorder %s34, 0
    %p167 = por %p165, %p166
    %p168 = scmp.ne.s32.totalorder %s154, %s155
    %p169 = scmp.eq.s32.totalorder %s35, 1
    %p170 = por %p168, %p169
    %p172 = scmp.ne.s32.totalorder %s155, %s171
    %p173 = scmp.eq.s32.totalorder %s35, 0
    %p174 = por %p172, %p173
    %s175 = sshra.s32 %s37, 7
    %s176 = sand.u32 %s37, 127
    %s177 = sadd.s32 %s175, %s36
    %s178 = smul.u32 %s177, 128
    %s179 = sshra.s32 %s37, 7
    %s180 = sand.u32 %s37, 127
    %s181 = sadd.s32 %s178, %s180
    %s182 = sld [smem:[#allocation4 + %s181]]
    %s183 = sshra.s32 %s44, 7
    %s184 = sand.u32 %s44, 127
    %s185 = sadd.s32 %s183, %s48
    %s186 = smul.u32 %s185, 128
    %s187 = sshra.s32 %s44, 7
    %s188 = sand.u32 %s44, 127
    %s189 = sadd.s32 %s186, %s188
    %s190 = sld [smem:[#allocation4 + %s189]]
    %s191 = ssub.s32 %s182, %s190
    %p192 = scmp.eq.s32.totalorder %s191, 0
    %s194 = sadd.s32 %s193, 1
    %s195 = scalar_select %p192, %s193, %s194
    %p198 = pneg %p192
    %p199 = scmp.eq.s32.totalorder %s29, 1
    %p200 = por %p198, %p199
    %p201 = scmp.ne.s32.totalorder %s193, %s196
    %p202 = scmp.eq.s32.totalorder %s29, 0
    %p203 = por %p201, %p202
    %p204 = scmp.ne.s32.totalorder %s193, %s196
    %p205 = scmp.eq.s32.totalorder %s34, 1
    %p206 = por %p204, %p205
    %p207 = scmp.ne.s32.totalorder %s196, %s197
    %p208 = scmp.eq.s32.totalorder %s34, 0
    %p209 = por %p207, %p208
    %p210 = scmp.ne.s32.totalorder %s196, %s197
    %p211 = scmp.eq.s32.totalorder %s35, 1
    %p212 = por %p210, %p211
    %p214 = scmp.ne.s32.totalorder %s197, %s213
    %p215 = scmp.eq.s32.totalorder %s35, 0
    %p216 = por %p214, %p215
    %s218 = sadd.s32 %s217, 1
    %p221 = scmp.eq.s32.totalorder %s29, 1
    %p222 = scmp.ne.s32.totalorder %s217, %s219
    %p223 = scmp.eq.s32.totalorder %s29, 0
    %p224 = por %p222, %p223
    %p225 = scmp.ne.s32.totalorder %s217, %s219
    %p226 = scmp.eq.s32.totalorder %s34, 1
    %p227 = por %p225, %p226
    %p228 = scmp.ne.s32.totalorder %s219, %s220
    %p229 = scmp.eq.s32.totalorder %s34, 0
    %p230 = por %p228, %p229
    %p231 = scmp.ne.s32.totalorder %s219, %s220
    %p232 = scmp.eq.s32.totalorder %s35, 1
    %p233 = por %p231, %p232
    %p235 = scmp.ne.s32.totalorder %s220, %s234
    %p236 = scmp.eq.s32.totalorder %s35, 0
    %p237 = por %p235, %p236
    %s239 = sadd.s32 %s238, 1
    %p242 = scmp.eq.s32.totalorder %s29, 1
    %p243 = scmp.ne.s32.totalorder %s238, %s240
    %p244 = scmp.eq.s32.totalorder %s29, 0
    %p245 = por %p243, %p244
    %p246 = scmp.ne.s32.totalorder %s238, %s240
    %p247 = scmp.eq.s32.totalorder %s34, 1
    %p248 = por %p246, %p247
    %p249 = scmp.ne.s32.totalorder %s240, %s241
    %p250 = scmp.eq.s32.totalorder %s34, 0
    %p251 = por %p249, %p250
    %p252 = scmp.ne.s32.totalorder %s240, %s241
    %p253 = scmp.eq.s32.totalorder %s35, 1
    %p254 = por %p252, %p253
    %p256 = scmp.ne.s32.totalorder %s241, %s255
    %p257 = scmp.eq.s32.totalorder %s35, 0
    %p258 = por %p256, %p257
    %s259 = ssub.s32 %s36, %s48
    %p260 = scmp.eq.s32.totalorder %s259, 0
    %s262 = sadd.s32 %s261, 1
    %s263 = scalar_select %p260, %s261, %s262
    %p266 = pneg %p260
    %p267 = scmp.eq.s32.totalorder %s29, 1
    %p268 = por %p266, %p267
    %p269 = scmp.ne.s32.totalorder %s261, %s264
    %p270 = scmp.eq.s32.totalorder %s29, 0
    %p271 = por %p269, %p270
    %p272 = scmp.ne.s32.totalorder %s261, %s264
    %p273 = scmp.eq.s32.totalorder %s34, 1
    %p274 = por %p272, %p273
    %p275 = scmp.ne.s32.totalorder %s264, %s265
    %p276 = scmp.eq.s32.totalorder %s34, 0
    %p277 = por %p275, %p276
    %p278 = scmp.ne.s32.totalorder %s264, %s265
    %p279 = scmp.eq.s32.totalorder %s35, 1
    %p280 = por %p278, %p279
    %p282 = scmp.ne.s32.totalorder %s265, %s281
    %p283 = scmp.eq.s32.totalorder %s35, 0
    %p284 = por %p282, %p283
    %p285 = scmp.le.s32.totalorder 1, %s29
    %p286 = scmp.lt.s32.totalorder %s29, 3
    %p287 = pnand %p285, %p286
    %p288 = pneg %p287
    // Predicated region
    $region9: #{tpu_custom_call.1} parent=5 // pred_check
      _
    $region10: #{tpu_custom_call.1} parent=5 // pred_check_branch
      %290 = sbr.rel (%p287) target = $region12
    $region11: #{tpu_custom_call.1} parent=5 // pred_region
      %s291 = ssub.s32 %s29, 1
      // Predicated region
      $region13: #{tpu_custom_call.1} parent=11 // pred_check
        %p292 = pneg %p230
      $region14: #{tpu_custom_call.1} parent=11 // pred_check_branch
        %294 = sbr.rel (%p292) target = $region16
      $region15: #{tpu_custom_call.1} parent=11 // pred_region
        _
      $region16: #{tpu_custom_call.1} parent=11 // pred_fallthru
        _
      // Predicated region
      $region17: #{tpu_custom_call.1} parent=11 // pred_check
        %p295 = pneg %p251
      $region18: #{tpu_custom_call.1} parent=11 // pred_check_branch
        %297 = sbr.rel (%p295) target = $region20
      $region19: #{tpu_custom_call.1} parent=11 // pred_region
        _
      $region20: #{tpu_custom_call.1} parent=11 // pred_fallthru
        _
    $region12: #{tpu_custom_call.1} parent=5 // pred_fallthru
      _
    %p298 = scmp.lt.s32.totalorder %s29, 2
    // Predicated region
    $region21: #{tpu_custom_call.1} parent=5 // pred_check
      %p299 = pneg %p298
    $region22: #{tpu_custom_call.1} parent=5 // pred_check_branch
      %301 = sbr.rel (%p299) target = $region24
    $region23: #{tpu_custom_call.1} parent=5 // pred_region
      // Predicated region
      $region25: #{tpu_custom_call.1} parent=23 // pred_check
        %p302 = pneg %p77
      $region26: #{tpu_custom_call.1} parent=23 // pred_check_branch
        %304 = sbr.rel (%p302) target = $region28
      $region27: #{tpu_custom_call.1} parent=23 // pred_region
        %s305 = sshra.s32 %s37, 7
        %s306 = sand.u32 %s37, 127
        %s307 = sadd.s32 %s305, %s36
        %s308 = smul.u32 %s307, 128
        %s309 = sshra.s32 %s37, 7
        %s310 = sand.u32 %s37, 127
        %s311 = sadd.s32 %s308, %s310
        %s312 = sld [smem:[#allocation4 + %s311]]
        %s313 = smul.u32 16, %s312
        %p314 = scmp.lt.s32.totalorder %s313, 15
        %s315 = scalar_select %p314, %s313, 15
        %s316 = smul.addr %s315, 8
        %s317 = scalar_lea.vmem %s3, %s316
        %s318 = sshra.s32 %s37, 7
        %s319 = sand.u32 %s37, 127
        %s320 = sadd.s32 %s318, %s36
        %s321 = smul.u32 %s320, 128
        %s322 = sshra.s32 %s37, 7
        %s323 = sand.u32 %s37, 127
        %s324 = sadd.s32 %s321, %s323
        %s325 = sld [smem:[#allocation4 + %s324]]
        %s326 = smul.u32 16, %s325
      $region28: #{tpu_custom_call.1} parent=23 // pred_fallthru
        _
      // Predicated region
      $region29: #{tpu_custom_call.1} parent=23 // pred_check
        %p327 = pneg %p119
      $region30: #{tpu_custom_call.1} parent=23 // pred_check_branch
        %329 = sbr.rel (%p327) target = $region32
      $region31: #{tpu_custom_call.1} parent=23 // pred_region
        %s330 = sshra.s32 %s37, 7
        %s331 = sand.u32 %s37, 127
        %s332 = sadd.s32 %s330, %s36
        %s333 = smul.u32 %s332, 128
        %s334 = sshra.s32 %s37, 7
        %s335 = sand.u32 %s37, 127
        %s336 = sadd.s32 %s333, %s335
        %s337 = sld [smem:[#allocation5 + %s336]]
        %s338 = smul.u32 16, %s337
        %p339 = scmp.lt.s32.totalorder %s338, 15
        %s340 = scalar_select %p339, %s338, 15
        %s341 = smul.addr %s340, 8
        %s342 = scalar_lea.vmem %s4, %s341
        %s343 = sshra.s32 %s37, 7
        %s344 = sand.u32 %s37, 127
        %s345 = sadd.s32 %s343, %s36
        %s346 = smul.u32 %s345, 128
        %s347 = sshra.s32 %s37, 7
        %s348 = sand.u32 %s37, 127
        %s349 = sadd.s32 %s346, %s348
        %s350 = sld [smem:[#allocation5 + %s349]]
        %s351 = smul.u32 16, %s350
      $region32: #{tpu_custom_call.1} parent=23 // pred_fallthru
        _
      // Predicated region
      $region33: #{tpu_custom_call.1} parent=23 // pred_check
        %p352 = pneg %p161
      $region34: #{tpu_custom_call.1} parent=23 // pred_check_branch
        %354 = sbr.rel (%p352) target = $region36
      $region35: #{tpu_custom_call.1} parent=23 // pred_region
        %s355 = sshra.s32 %s37, 7
        %s356 = sand.u32 %s37, 127
        %s357 = sadd.s32 %s355, %s36
        %s358 = smul.u32 %s357, 128
        %s359 = sshra.s32 %s37, 7
        %s360 = sand.u32 %s37, 127
        %s361 = sadd.s32 %s358, %s360
        %s362 = sld [smem:[#allocation4 + %s361]]
        %s363 = smul.u32 16, %s362
        %p364 = scmp.lt.s32.totalorder %s363, 15
        %s365 = scalar_select %p364, %s363, 15
        %s366 = smul.addr %s365, 8
        %s367 = scalar_lea.vmem %s5, %s366
        %s368 = sshra.s32 %s37, 7
        %s369 = sand.u32 %s37, 127
        %s370 = sadd.s32 %s368, %s36
        %s371 = smul.u32 %s370, 128
        %s372 = sshra.s32 %s37, 7
        %s373 = sand.u32 %s37, 127
        %s374 = sadd.s32 %s371, %s373
        %s375 = sld [smem:[#allocation4 + %s374]]
        %s376 = smul.u32 16, %s375
      $region36: #{tpu_custom_call.1} parent=23 // pred_fallthru
        _
      // Predicated region
      $region37: #{tpu_custom_call.1} parent=23 // pred_check
        %p377 = pneg %p203
      $region38: #{tpu_custom_call.1} parent=23 // pred_check_branch
        %379 = sbr.rel (%p377) target = $region40
      $region39: #{tpu_custom_call.1} parent=23 // pred_region
        %s380 = sshra.s32 %s37, 7
        %s381 = sand.u32 %s37, 127
        %s382 = sadd.s32 %s380, %s36
        %s383 = smul.u32 %s382, 128
        %s384 = sshra.s32 %s37, 7
        %s385 = sand.u32 %s37, 127
        %s386 = sadd.s32 %s383, %s385
        %s387 = sld [smem:[#allocation4 + %s386]]
        %s388 = smul.u32 16, %s387
        %p389 = scmp.lt.s32.totalorder %s388, 15
        %s390 = scalar_select %p389, %s388, 15
        %s391 = smul.addr %s390, 8
        %s392 = scalar_lea.vmem %s6, %s391
        %s393 = sshra.s32 %s37, 7
        %s394 = sand.u32 %s37, 127
        %s395 = sadd.s32 %s393, %s36
        %s396 = smul.u32 %s395, 128
        %s397 = sshra.s32 %s37, 7
        %s398 = sand.u32 %s37, 127
        %s399 = sadd.s32 %s396, %s398
        %s400 = sld [smem:[#allocation4 + %s399]]
        %s401 = smul.u32 16, %s400
      $region40: #{tpu_custom_call.1} parent=23 // pred_fallthru
        _
    $region24: #{tpu_custom_call.1} parent=5 // pred_fallthru
      _
    %p402 = scmp.le.s32.totalorder 1, %s29
    %p403 = scmp.lt.s32.totalorder %s29, 3
    %p404 = pnand %p402, %p403
    %p405 = pneg %p404
    // Predicated region
    $region41: #{tpu_custom_call.1} parent=5 // pred_check
      _
    $region42: #{tpu_custom_call.1} parent=5 // pred_check_branch
      %407 = sbr.rel (%p404) target = $region44
    $region43: #{tpu_custom_call.1} parent=5 // pred_region
      %s408 = ssub.s32 %s29, 1
      %s409 = sshra.s32 %s39, 7
      %s410 = sand.u32 %s39, 127
      %s411 = sadd.s32 %s409, %s38
      %s412 = smul.u32 %s411, 128
      %s413 = sshra.s32 %s39, 7
      %s414 = sand.u32 %s39, 127
      %s415 = sadd.s32 %s412, %s414
      %s416 = sld [smem:[#allocation4 + %s415]]
      %s417 = smul.u32 16, %s416
      %p418 = scmp.lt.s32.totalorder %s417, 15
      %s419 = scalar_select %p418, %s417, 15
      %s420 = smul.addr %s419, 8
      %s421 = scalar_lea.vmem %s3, %s420
      %p422 = pneg %p83
      %p423 = pneg %p80
      %s424 = sshra.s32 %s39, 7
      %s425 = sand.u32 %s39, 127
      %s426 = sadd.s32 %s424, %s38
      %s427 = smul.u32 %s426, 128
      %s428 = sshra.s32 %s39, 7
      %s429 = sand.u32 %s39, 127
      %s430 = sadd.s32 %s427, %s429
      %s431 = sld [smem:[#allocation5 + %s430]]
      %s432 = smul.u32 16, %s431
      %p433 = scmp.lt.s32.totalorder %s432, 15
      %s434 = scalar_select %p433, %s432, 15
      %s435 = smul.addr %s434, 8
      %s436 = scalar_lea.vmem %s4, %s435
      %p437 = pneg %p125
      %p438 = pneg %p122
      %s439 = sshra.s32 %s39, 7
      %s440 = sand.u32 %s39, 127
      %s441 = sadd.s32 %s439, %s38
      %s442 = smul.u32 %s441, 128
      %s443 = sshra.s32 %s39, 7
      %s444 = sand.u32 %s39, 127
      %s445 = sadd.s32 %s442, %s444
      %s446 = sld [smem:[#allocation4 + %s445]]
      %s447 = smul.u32 16, %s446
      %p448 = scmp.lt.s32.totalorder %s447, 15
      %s449 = scalar_select %p448, %s447, 15
      %s450 = smul.addr %s449, 8
      %s451 = scalar_lea.vmem %s5, %s450
      %p452 = pneg %p167
      %p453 = pneg %p164
      %s454 = sshra.s32 %s39, 7
      %s455 = sand.u32 %s39, 127
      %s456 = sadd.s32 %s454, %s38
      %s457 = smul.u32 %s456, 128
      %s458 = sshra.s32 %s39, 7
      %s459 = sand.u32 %s39, 127
      %s460 = sadd.s32 %s457, %s459
      %s461 = sld [smem:[#allocation4 + %s460]]
      %s462 = smul.u32 16, %s461
      %p463 = scmp.lt.s32.totalorder %s462, 15
      %s464 = scalar_select %p463, %s462, 15
      %s465 = smul.addr %s464, 8
      %s466 = scalar_lea.vmem %s6, %s465
      %p467 = pneg %p209
      %p468 = pneg %p206
      %p469 = pneg %p230
      %p470 = pneg %p227
      %p471 = pneg %p251
      %p472 = pneg %p248
      %p473 = pneg %p277
      %p474 = pneg %p274
      %p475 = scmp.lt.s32.totalorder %s38, 1
      %s476 = scalar_select %p475, %s38, 1
      %s477 = scalar_lea.vmem %s9, %s476
      %s478 = sshra.s32 %s39, 7
      %s479 = sand.u32 %s39, 127
      %s480 = sadd.s32 %s478, %s38
      %s481 = smul.u32 %s480, 128
      %s482 = sshra.s32 %s39, 7
      %s483 = sand.u32 %s39, 127
      %s484 = sadd.s32 %s481, %s483
      %s485 = sld [smem:[#allocation4 + %s484]]
      %s486 = smul.u32 16, %s485
      %p487 = scmp.lt.s32.totalorder %s486, 15
      %s488 = scalar_select %p487, %s486, 15
      %s489 = smul.addr %s488, 8
      %s490 = scalar_lea.vmem %s3, %s489
      %s491 = sshra.s32 %s39, 7
      %s492 = sand.u32 %s39, 127
      %s493 = sadd.s32 %s491, %s38
      %s494 = smul.u32 %s493, 128
      %s495 = sshra.s32 %s39, 7
      %s496 = sand.u32 %s39, 127
      %s497 = sadd.s32 %s494, %s496
      %s498 = sld [smem:[#allocation4 + %s497]]
      %s499 = smul.u32 16, %s498
      %s500 = sshra.s32 %s39, 7
      %s501 = sand.u32 %s39, 127
      %s502 = sadd.s32 %s500, %s38
      %s503 = smul.u32 %s502, 128
      %s504 = sshra.s32 %s39, 7
      %s505 = sand.u32 %s39, 127
      %s506 = sadd.s32 %s503, %s505
      %s507 = sld [smem:[#allocation5 + %s506]]
      %s508 = smul.u32 16, %s507
      %p509 = scmp.lt.s32.totalorder %s508, 15
      %s510 = scalar_select %p509, %s508, 15
      %s511 = smul.addr %s510, 8
      %s512 = scalar_lea.vmem %s4, %s511
      %s513 = sshra.s32 %s39, 7
      %s514 = sand.u32 %s39, 127
      %s515 = sadd.s32 %s513, %s38
      %s516 = smul.u32 %s515, 128
      %s517 = sshra.s32 %s39, 7
      %s518 = sand.u32 %s39, 127
      %s519 = sadd.s32 %s516, %s518
      %s520 = sld [smem:[#allocation5 + %s519]]
      %s521 = smul.u32 16, %s520
      %s522 = sshra.s32 %s39, 7
      %s523 = sand.u32 %s39, 127
      %s524 = sadd.s32 %s522, %s38
      %s525 = smul.u32 %s524, 128
      %s526 = sshra.s32 %s39, 7
      %s527 = sand.u32 %s39, 127
      %s528 = sadd.s32 %s525, %s527
      %s529 = sld [smem:[#allocation4 + %s528]]
      %s530 = smul.u32 16, %s529
      %p531 = scmp.lt.s32.totalorder %s530, 15
      %s532 = scalar_select %p531, %s530, 15
      %s533 = smul.addr %s532, 8
      %s534 = scalar_lea.vmem %s5, %s533
      %s535 = sshra.s32 %s39, 7
      %s536 = sand.u32 %s39, 127
      %s537 = sadd.s32 %s535, %s38
      %s538 = smul.u32 %s537, 128
      %s539 = sshra.s32 %s39, 7
      %s540 = sand.u32 %s39, 127
      %s541 = sadd.s32 %s538, %s540
      %s542 = sld [smem:[#allocation4 + %s541]]
      %s543 = smul.u32 16, %s542
      %s544 = sshra.s32 %s39, 7
      %s545 = sand.u32 %s39, 127
      %s546 = sadd.s32 %s544, %s38
      %s547 = smul.u32 %s546, 128
      %s548 = sshra.s32 %s39, 7
      %s549 = sand.u32 %s39, 127
      %s550 = sadd.s32 %s547, %s549
      %s551 = sld [smem:[#allocation4 + %s550]]
      %s552 = smul.u32 16, %s551
      %p553 = scmp.lt.s32.totalorder %s552, 15
      %s554 = scalar_select %p553, %s552, 15
      %s555 = smul.addr %s554, 8
      %s556 = scalar_lea.vmem %s6, %s555
      %s557 = sshra.s32 %s39, 7
      %s558 = sand.u32 %s39, 127
      %s559 = sadd.s32 %s557, %s38
      %s560 = smul.u32 %s559, 128
      %s561 = sshra.s32 %s39, 7
      %s562 = sand.u32 %s39, 127
      %s563 = sadd.s32 %s560, %s562
      %s564 = sld [smem:[#allocation4 + %s563]]
      %s565 = smul.u32 16, %s564
      %p566 = scmp.lt.s32.totalorder %s38, 1
      %s567 = scalar_select %p566, %s38, 1
      %s568 = scalar_lea.vmem %s9, %s567
      %p569 = scmp.eq.s32.totalorder %s39, 0
      // Predicated region
      $region45: #{tpu_custom_call.1} parent=43 // pred_check
        %p570 = pneg %p569
      $region46: #{tpu_custom_call.1} parent=43 // pred_check_branch
        %572 = sbr.rel (%p570) target = $region48
      $region47: #{tpu_custom_call.1} parent=43 // pred_region
        %573 = vst [vmem:[#allocation2] sm:$0xff] 0.0
        %574 = vst [vmem:[#allocation2 + $0x8] sm:$0xff] 0.0
        %575 = vst [vmem:[#allocation2 + $0x10] sm:$0xff] 0.0
        %576 = vst [vmem:[#allocation2 + $0x18] sm:$0xff] 0.0
        %577 = vst [vmem:[#allocation2 + $0x20] sm:$0xff] 0.0
        %578 = vst [vmem:[#allocation2 + $0x28] sm:$0xff] 0.0
        %579 = vst [vmem:[#allocation2 + $0x30] sm:$0xff] 0.0
        %580 = vst [vmem:[#allocation2 + $0x38] sm:$0xff] 0.0
        %581 = vst [vmem:[#allocation2 + $0x40] sm:$0xff] 0.0
        %582 = vst [vmem:[#allocation2 + $0x48] sm:$0xff] 0.0
        %583 = vst [vmem:[#allocation2 + $0x50] sm:$0xff] 0.0
        %584 = vst [vmem:[#allocation2 + $0x58] sm:$0xff] 0.0
        %585 = vst [vmem:[#allocation2 + $0x60] sm:$0xff] 0.0
        %586 = vst [vmem:[#allocation2 + $0x68] sm:$0xff] 0.0
        %587 = vst [vmem:[#allocation2 + $0x70] sm:$0xff] 0.0
        %588 = vst [vmem:[#allocation2 + $0x78] sm:$0xff] 0.0
      $region48: #{tpu_custom_call.1} parent=43 // pred_fallthru
        _
      %s589 = sshra.s32 %s39, 7
      %s590 = sand.u32 %s39, 127
      %s591 = sadd.s32 %s589, %s38
      %s592 = smul.u32 %s591, 128
      %s593 = sshra.s32 %s39, 7
      %s594 = sand.u32 %s39, 127
      %s595 = sadd.s32 %s592, %s594
      %s596 = sld [smem:[#allocation5 + %s595]]
      %s597 = smul.u32 %s596, 128
      %s598 = sshra.s32 %s597, 7
      %s599 = sand.u32 %s597, 127
      %s600 = scalar_lea.vmem %s7, %s598
      %v601 = vld [vmem:[%s600] sm:$0x1]
      %s602 = scalar_lea.vmem %s8, %s598
      %v603 = vld [vmem:[%s602] sm:$0x1]
      %v604 = vld [vmem:[%s490] sm:$0xff]
      %v605 = vld [vmem:[%s490 + $0x8] sm:$0xff]
      %v606 = vld [vmem:[%s490 + $0x10] sm:$0xff]
      %v607 = vld [vmem:[%s490 + $0x18] sm:$0xff]
      %v608 = vld [vmem:[%s490 + $0x20] sm:$0xff]
      %v609 = vld [vmem:[%s490 + $0x28] sm:$0xff]
      %v610 = vld [vmem:[%s490 + $0x30] sm:$0xff]
      %v611 = vld [vmem:[%s490 + $0x38] sm:$0xff]
      %v612 = vld [vmem:[%s490 + $0x40] sm:$0xff]
      %v613 = vld [vmem:[%s490 + $0x48] sm:$0xff]
      %v614 = vld [vmem:[%s490 + $0x50] sm:$0xff]
      %v615 = vld [vmem:[%s490 + $0x58] sm:$0xff]
      %v616 = vld [vmem:[%s490 + $0x60] sm:$0xff]
      %v617 = vld [vmem:[%s490 + $0x68] sm:$0xff]
      %v618 = vld [vmem:[%s490 + $0x70] sm:$0xff]
      %v619 = vld [vmem:[%s490 + $0x78] sm:$0xff]
      %v620 = vld [vmem:[%s512] sm:$0xff]
      %v621 = vld [vmem:[%s512 + $0x8] sm:$0xff]
      %v622 = vld [vmem:[%s512 + $0x10] sm:$0xff]
      %v623 = vld [vmem:[%s512 + $0x18] sm:$0xff]
      %v624 = vld [vmem:[%s512 + $0x20] sm:$0xff]
      %v625 = vld [vmem:[%s512 + $0x28] sm:$0xff]
      %v626 = vld [vmem:[%s512 + $0x30] sm:$0xff]
      %v627 = vld [vmem:[%s512 + $0x38] sm:$0xff]
      %v628 = vld [vmem:[%s512 + $0x40] sm:$0xff]
      %v629 = vld [vmem:[%s512 + $0x48] sm:$0xff]
      %v630 = vld [vmem:[%s512 + $0x50] sm:$0xff]
      %v631 = vld [vmem:[%s512 + $0x58] sm:$0xff]
      %v632 = vld [vmem:[%s512 + $0x60] sm:$0xff]
      %v633 = vld [vmem:[%s512 + $0x68] sm:$0xff]
      %v634 = vld [vmem:[%s512 + $0x70] sm:$0xff]
      %v635 = vld [vmem:[%s512 + $0x78] sm:$0xff]
      %vm636 = vcmask 261120
      %v638 = vsel %vm636, %v604, 0
      %v641 = vsel %vm636, %v605, 0
      %v644 = vsel %vm636, %v606, 0
      %v647 = vsel %vm636, %v607, 0
      %v650 = vsel %vm636, %v608, 0
      %v653 = vsel %vm636, %v609, 0
      %v656 = vsel %vm636, %v610, 0
      %v659 = vsel %vm636, %v611, 0
      %v662 = vsel %vm636, %v612, 0
      %v665 = vsel %vm636, %v613, 0
      %v668 = vsel %vm636, %v614, 0
      %v671 = vsel %vm636, %v615, 0
      %v674 = vsel %vm636, %v616, 0
      %v677 = vsel %vm636, %v617, 0
      %v680 = vsel %vm636, %v618, 0
      %v683 = vsel %vm636, %v619, 0
      %v686 = vsel %vm636, %v620, 0
      %v689 = vsel %vm636, %v621, 0
      %v692 = vsel %vm636, %v622, 0
      %v695 = vsel %vm636, %v623, 0
      %v698 = vsel %vm636, %v624, 0
      %v701 = vsel %vm636, %v625, 0
      %v704 = vsel %vm636, %v626, 0
      %v707 = vsel %vm636, %v627, 0
      %v710 = vsel %vm636, %v628, 0
      %v713 = vsel %vm636, %v629, 0
      %v716 = vsel %vm636, %v630, 0
      %v719 = vsel %vm636, %v631, 0
      %v722 = vsel %vm636, %v632, 0
      %v725 = vsel %vm636, %v633, 0
      %v728 = vsel %vm636, %v634, 0
      %v731 = vsel %vm636, %v635, 0
      %733 = vmatprep.subr.mxu0 0.0
      %734 = vmatpush1.xpose.msra.mxu0 %v686
      %735 = vmatprep.subr.mxu0 0.0
      %736 = vmatpush1.xpose.msra.mxu0 %v689
      %737 = vmatprep.subr.mxu0 0.0
      %738 = vmatpush1.xpose.msra.mxu0 %v692
      %739 = vmatprep.subr.mxu0 0.0
      %740 = vmatpush1.xpose.msra.mxu0 %v695
      %741 = vmatprep.subr.mxu0 0.0
      %742 = vmatpush1.xpose.msra.mxu0 %v698
      %743 = vmatprep.subr.mxu0 0.0
      %744 = vmatpush1.xpose.msra.mxu0 %v701
      %745 = vmatprep.subr.mxu0 0.0
      %746 = vmatpush1.xpose.msra.mxu0 %v704
      %747 = vmatprep.subr.mxu0 0.0
      %748 = vmatpush1.xpose.msra.mxu0 %v707
      %749 = vmatprep.subr.mxu0 0.0
      %750 = vmatpush1.xpose.msra.mxu0 %v710
      %751 = vmatprep.subr.mxu0 0.0
      %752 = vmatpush1.xpose.msra.mxu0 %v713
      %753 = vmatprep.subr.mxu0 0.0
      %754 = vmatpush1.xpose.msra.mxu0 %v716
      %755 = vmatprep.subr.mxu0 0.0
      %756 = vmatpush1.xpose.msra.mxu0 %v719
      %757 = vmatprep.subr.mxu0 0.0
      %758 = vmatpush1.xpose.msra.mxu0 %v722
      %759 = vmatprep.subr.mxu0 0.0
      %760 = vmatpush1.xpose.msra.mxu0 %v725
      %761 = vmatprep.subr.mxu0 0.0
      %762 = vmatpush1.xpose.msra.mxu0 %v728
      %763 = vmatprep.subr.mxu0 0.0
      %764 = vmatpush1.xpose.msra.mxu0 %v731
      %765 = vmatprep.subr.mxu0 0.0
      %766 = vmatpush1.xpose.msra.mxu0 0.0
      %767 = vmatprep.subr.mxu0 0.0
      %768 = vmatpush1.xpose.msra.mxu0 0.0
      %769 = vmatprep.subr.mxu0 0.0
      %770 = vmatpush1.xpose.msra.mxu0 0.0
      %771 = vmatprep.subr.mxu0 0.0
      %772 = vmatpush1.xpose.msra.mxu0 0.0
      %773 = vmatprep.subr.mxu0 0.0
      %774 = vmatpush1.xpose.msra.mxu0 0.0
      %775 = vmatprep.subr.mxu0 0.0
      %776 = vmatpush1.xpose.msra.mxu0 0.0
      %777 = vmatprep.subr.mxu0 0.0
      %778 = vmatpush1.xpose.msra.mxu0 0.0
      %779 = vmatprep.subr.mxu0 0.0
      %780 = vmatpush1.xpose.msra.mxu0 0.0
      %781 = vmatprep.subr.mxu0 0.0
      %782 = vmatpush1.xpose.msra.mxu0 0.0
      %783 = vmatprep.subr.mxu0 0.0
      %784 = vmatpush1.xpose.msra.mxu0 0.0
      %785 = vmatprep.subr.mxu0 0.0
      %786 = vmatpush1.xpose.msra.mxu0 0.0
      %787 = vmatprep.subr.mxu0 0.0
      %788 = vmatpush1.xpose.msra.mxu0 0.0
      %789 = vmatprep.subr.mxu0 0.0
      %790 = vmatpush1.xpose.msra.mxu0 0.0
      %791 = vmatprep.subr.mxu0 0.0
      %792 = vmatpush1.xpose.msra.mxu0 0.0
      %793 = vmatprep.subr.mxu0 0.0
      %794 = vmatpush1.xpose.msra.mxu0 0.0
      %795 = vmatprep.subr.mxu0 0.0
      %796 = vmatpush1.xpose.msra.mxu0 0.0
      %797 = vmatprep.mubr.f32.mxu0 0.0
      %798 = vmatmul.mubr.f32.gmra.mrb[0].mxu0 %v638
      %v799 = vpop.f32.mrb[0].mxu0
      %v800 = vadd.f32 0.0, %v799
      %v801 = vpop.f32.mrb[0].mxu0
      %802 = vmatprep.mubr.f32.mxu0 0.0
      %803 = vmatmul.mubr.f32.gmra.mrb[0].mxu0 %v641
      %v804 = vpop.f32.mrb[0].mxu0
      %v805 = vadd.f32 0.0, %v804
      %v806 = vpop.f32.mrb[0].mxu0
      %807 = vmatprep.mubr.f32.mxu0 0.0
      %808 = vmatmul.mubr.f32.gmra.mrb[0].mxu0 %v644
      %v809 = vpop.f32.mrb[0].mxu0
      %v810 = vadd.f32 0.0, %v809
      %v811 = vpop.f32.mrb[0].mxu0
      %812 = vmatprep.mubr.f32.mxu0 0.0
      %813 = vmatmul.mubr.f32.gmra.mrb[0].mxu0 %v647
      %v814 = vpop.f32.mrb[0].mxu0
      %v815 = vadd.f32 0.0, %v814
      %v816 = vpop.f32.mrb[0].mxu0
      %817 = vmatprep.mubr.f32.mxu0 0.0
      %818 = vmatmul.mubr.f32.gmra.mrb[0].mxu0 %v650
      %v819 = vpop.f32.mrb[0].mxu0
      %v820 = vadd.f32 0.0, %v819
      %v821 = vpop.f32.mrb[0].mxu0
      %822 = vmatprep.mubr.f32.mxu0 0.0
      %823 = vmatmul.mubr.f32.gmra.mrb[0].mxu0 %v653
      %v824 = vpop.f32.mrb[0].mxu0
      %v825 = vadd.f32 0.0, %v824
      %v826 = vpop.f32.mrb[0].mxu0
      %827 = vmatprep.mubr.f32.mxu0 0.0
      %828 = vmatmul.mubr.f32.gmra.mrb[0].mxu0 %v656
      %v829 = vpop.f32.mrb[0].mxu0
      %v830 = vadd.f32 0.0, %v829
      %v831 = vpop.f32.mrb[0].mxu0
      %832 = vmatprep.mubr.f32.mxu0 0.0
      %833 = vmatmul.mubr.f32.gmra.mrb[0].mxu0 %v659
      %v834 = vpop.f32.mrb[0].mxu0
      %v835 = vadd.f32 0.0, %v834
      %v836 = vpop.f32.mrb[0].mxu0
      %837 = vmatprep.mubr.f32.mxu0 0.0
      %838 = vmatmul.mubr.f32.gmra.mrb[0].mxu0 %v662
      %v839 = vpop.f32.mrb[0].mxu0
      %v840 = vadd.f32 0.0, %v839
      %v841 = vpop.f32.mrb[0].mxu0
      %842 = vmatprep.mubr.f32.mxu0 0.0
      %843 = vmatmul.mubr.f32.gmra.mrb[0].mxu0 %v665
      %v844 = vpop.f32.mrb[0].mxu0
      %v845 = vadd.f32 0.0, %v844
      %v846 = vpop.f32.mrb[0].mxu0
      %847 = vmatprep.mubr.f32.mxu0 0.0
      %848 = vmatmul.mubr.f32.gmra.mrb[0].mxu0 %v668
      %v849 = vpop.f32.mrb[0].mxu0
      %v850 = vadd.f32 0.0, %v849
      %v851 = vpop.f32.mrb[0].mxu0
      %852 = vmatprep.mubr.f32.mxu0 0.0
      %853 = vmatmul.mubr.f32.gmra.mrb[0].mxu0 %v671
      %v854 = vpop.f32.mrb[0].mxu0
      %v855 = vadd.f32 0.0, %v854
      %v856 = vpop.f32.mrb[0].mxu0
      %857 = vmatprep.mubr.f32.mxu0 0.0
      %858 = vmatmul.mubr.f32.gmra.mrb[0].mxu0 %v674
      %v859 = vpop.f32.mrb[0].mxu0
      %v860 = vadd.f32 0.0, %v859
      %v861 = vpop.f32.mrb[0].mxu0
      %862 = vmatprep.mubr.f32.mxu0 0.0
      %863 = vmatmul.mubr.f32.gmra.mrb[0].mxu0 %v677
      %v864 = vpop.f32.mrb[0].mxu0
      %v865 = vadd.f32 0.0, %v864
      %v866 = vpop.f32.mrb[0].mxu0
      %867 = vmatprep.mubr.f32.mxu0 0.0
      %868 = vmatmul.mubr.f32.gmra.mrb[0].mxu0 %v680
      %v869 = vpop.f32.mrb[0].mxu0
      %v870 = vadd.f32 0.0, %v869
      %v871 = vpop.f32.mrb[0].mxu0
      %872 = vmatprep.mubr.f32.mxu0 0.0
      %873 = vmatmul.mubr.f32.gmra.mrb[0].mxu0 %v683
      %v874 = vpop.f32.mrb[0].mxu0
      %v875 = vadd.f32 0.0, %v874
      %v876 = vpop.f32.mrb[0].mxu0
      %877 = vdwg.mxu0
      %v878 = vld [vmem:[%s534] sm:$0xff]
      %v879 = vld [vmem:[%s534 + $0x8] sm:$0xff]
      %v880 = vld [vmem:[%s534 + $0x10] sm:$0xff]
      %v881 = vld [vmem:[%s534 + $0x18] sm:$0xff]
      %v882 = vld [vmem:[%s534 + $0x20] sm:$0xff]
      %v883 = vld [vmem:[%s534 + $0x28] sm:$0xff]
      %v884 = vld [vmem:[%s534 + $0x30] sm:$0xff]
      %v885 = vld [vmem:[%s534 + $0x38] sm:$0xff]
      %v886 = vld [vmem:[%s534 + $0x40] sm:$0xff]
      %v887 = vld [vmem:[%s534 + $0x48] sm:$0xff]
      %v888 = vld [vmem:[%s534 + $0x50] sm:$0xff]
      %v889 = vld [vmem:[%s534 + $0x58] sm:$0xff]
      %v890 = vld [vmem:[%s534 + $0x60] sm:$0xff]
      %v891 = vld [vmem:[%s534 + $0x68] sm:$0xff]
      %v892 = vld [vmem:[%s534 + $0x70] sm:$0xff]
      %v893 = vld [vmem:[%s534 + $0x78] sm:$0xff]
      %895 = vset.pattern.permute.xlu0 0
      %896 = vperm.xlu0 %895, %v878
      %v897 = vpop.permute.xlu0 %896
      %900 = vset.pattern.permute.xlu0 0
      %901 = vperm.xlu0 %900, %v879
      %v902 = vpop.permute.xlu0 %901
      %905 = vset.pattern.permute.xlu0 0
      %906 = vperm.xlu0 %905, %v880
      %v907 = vpop.permute.xlu0 %906
      %910 = vset.pattern.permute.xlu0 0
      %911 = vperm.xlu0 %910, %v881
      %v912 = vpop.permute.xlu0 %911
      %915 = vset.pattern.permute.xlu0 0
      %916 = vperm.xlu0 %915, %v882
      %v917 = vpop.permute.xlu0 %916
      %920 = vset.pattern.permute.xlu0 0
      %921 = vperm.xlu0 %920, %v883
      %v922 = vpop.permute.xlu0 %921
      %925 = vset.pattern.permute.xlu0 0
      %926 = vperm.xlu0 %925, %v884
      %v927 = vpop.permute.xlu0 %926
      %930 = vset.pattern.permute.xlu0 0
      %931 = vperm.xlu0 %930, %v885
      %v932 = vpop.permute.xlu0 %931
      %935 = vset.pattern.permute.xlu0 0
      %936 = vperm.xlu0 %935, %v886
      %v937 = vpop.permute.xlu0 %936
      %940 = vset.pattern.permute.xlu0 0
      %941 = vperm.xlu0 %940, %v887
      %v942 = vpop.permute.xlu0 %941
      %945 = vset.pattern.permute.xlu0 0
      %946 = vperm.xlu0 %945, %v888
      %v947 = vpop.permute.xlu0 %946
      %950 = vset.pattern.permute.xlu0 0
      %951 = vperm.xlu0 %950, %v889
      %v952 = vpop.permute.xlu0 %951
      %955 = vset.pattern.permute.xlu0 0
      %956 = vperm.xlu0 %955, %v890
      %v957 = vpop.permute.xlu0 %956
      %960 = vset.pattern.permute.xlu0 0
      %961 = vperm.xlu0 %960, %v891
      %v962 = vpop.permute.xlu0 %961
      %965 = vset.pattern.permute.xlu0 0
      %966 = vperm.xlu0 %965, %v892
      %v967 = vpop.permute.xlu0 %966
      %970 = vset.pattern.permute.xlu0 0
      %971 = vperm.xlu0 %970, %v893
      %v972 = vpop.permute.xlu0 %971
      %v975 = vlaneseq
      %v976 = vshrl.u32 %v975, 7
      %v977 = vsub.s32 0, %v976
      %v978 = vrot.slane %v601, %v977
      %v980 = vadd.f32 %v897, %v978
      %v981 = vadd.f32 %v902, %v978
      %v982 = vadd.f32 %v907, %v978
      %v983 = vadd.f32 %v912, %v978
      %v984 = vadd.f32 %v917, %v978
      %v985 = vadd.f32 %v922, %v978
      %v986 = vadd.f32 %v927, %v978
      %v987 = vadd.f32 %v932, %v978
      %v988 = vadd.f32 %v937, %v978
      %v989 = vadd.f32 %v942, %v978
      %v990 = vadd.f32 %v947, %v978
      %v991 = vadd.f32 %v952, %v978
      %v992 = vadd.f32 %v957, %v978
      %v993 = vadd.f32 %v962, %v978
      %v994 = vadd.f32 %v967, %v978
      %v995 = vadd.f32 %v972, %v978
      %v996 = vmul.f32 %v800, 2.0
      %v997 = vmul.f32 %v805, 2.0
      %v998 = vmul.f32 %v810, 2.0
      %v999 = vmul.f32 %v815, 2.0
      %v1000 = vmul.f32 %v820, 2.0
      %v1001 = vmul.f32 %v825, 2.0
      %v1002 = vmul.f32 %v830, 2.0
      %v1003 = vmul.f32 %v835, 2.0
      %v1004 = vmul.f32 %v840, 2.0
      %v1005 = vmul.f32 %v845, 2.0
      %v1006 = vmul.f32 %v850, 2.0
      %v1007 = vmul.f32 %v855, 2.0
      %v1008 = vmul.f32 %v860, 2.0
      %v1009 = vmul.f32 %v865, 2.0
      %v1010 = vmul.f32 %v870, 2.0
      %v1011 = vmul.f32 %v875, 2.0
      %v1012 = vsub.f32 %v980, %v996
      %v1013 = vsub.f32 %v981, %v997
      %v1014 = vsub.f32 %v982, %v998
      %v1015 = vsub.f32 %v983, %v999
      %v1016 = vsub.f32 %v984, %v1000
      %v1017 = vsub.f32 %v985, %v1001
      %v1018 = vsub.f32 %v986, %v1002
      %v1019 = vsub.f32 %v987, %v1003
      %v1020 = vsub.f32 %v988, %v1004
      %v1021 = vsub.f32 %v989, %v1005
      %v1022 = vsub.f32 %v990, %v1006
      %v1023 = vsub.f32 %v991, %v1007
      %v1024 = vsub.f32 %v992, %v1008
      %v1025 = vsub.f32 %v993, %v1009
      %v1026 = vsub.f32 %v994, %v1010
      %v1027 = vsub.f32 %v995, %v1011
      %v1028 = vmax.f32 %v1012, 0.0
      %v1029 = vmax.f32 %v1013, 0.0
      %v1030 = vmax.f32 %v1014, 0.0
      %v1031 = vmax.f32 %v1015, 0.0
      %v1032 = vmax.f32 %v1016, 0.0
      %v1033 = vmax.f32 %v1017, 0.0
      %v1034 = vmax.f32 %v1018, 0.0
      %v1035 = vmax.f32 %v1019, 0.0
      %v1036 = vmax.f32 %v1020, 0.0
      %v1037 = vmax.f32 %v1021, 0.0
      %v1038 = vmax.f32 %v1022, 0.0
      %v1039 = vmax.f32 %v1023, 0.0
      %v1040 = vmax.f32 %v1024, 0.0
      %v1041 = vmax.f32 %v1025, 0.0
      %v1042 = vmax.f32 %v1026, 0.0
      %v1043 = vmax.f32 %v1027, 0.0
      %v1044 = vsub.f32 0.0, %v1028
      %v1045 = vsub.f32 0.0, %v1029
      %v1046 = vsub.f32 0.0, %v1030
      %v1047 = vsub.f32 0.0, %v1031
      %v1048 = vsub.f32 0.0, %v1032
      %v1049 = vsub.f32 0.0, %v1033
      %v1050 = vsub.f32 0.0, %v1034
      %v1051 = vsub.f32 0.0, %v1035
      %v1052 = vsub.f32 0.0, %v1036
      %v1053 = vsub.f32 0.0, %v1037
      %v1054 = vsub.f32 0.0, %v1038
      %v1055 = vsub.f32 0.0, %v1039
      %v1056 = vsub.f32 0.0, %v1040
      %v1057 = vsub.f32 0.0, %v1041
      %v1058 = vsub.f32 0.0, %v1042
      %v1059 = vsub.f32 0.0, %v1043
      %v1060 = vmul.f32 %v1044, 1.442695
      %v1061 = vpow.pop %v1060
      %v1062 = vmul.f32 %v1045, 1.442695
      %v1063 = vpow.pop %v1062
      %v1064 = vmul.f32 %v1046, 1.442695
      %v1065 = vpow.pop %v1064
      %v1066 = vmul.f32 %v1047, 1.442695
      %v1067 = vpow.pop %v1066
      %v1068 = vmul.f32 %v1048, 1.442695
      %v1069 = vpow.pop %v1068
      %v1070 = vmul.f32 %v1049, 1.442695
      %v1071 = vpow.pop %v1070
      %v1072 = vmul.f32 %v1050, 1.442695
      %v1073 = vpow.pop %v1072
      %v1074 = vmul.f32 %v1051, 1.442695
      %v1075 = vpow.pop %v1074
      %v1076 = vmul.f32 %v1052, 1.442695
      %v1077 = vpow.pop %v1076
      %v1078 = vmul.f32 %v1053, 1.442695
      %v1079 = vpow.pop %v1078
      %v1080 = vmul.f32 %v1054, 1.442695
      %v1081 = vpow.pop %v1080
      %v1082 = vmul.f32 %v1055, 1.442695
      %v1083 = vpow.pop %v1082
      %v1084 = vmul.f32 %v1056, 1.442695
      %v1085 = vpow.pop %v1084
      %v1086 = vmul.f32 %v1057, 1.442695
      %v1087 = vpow.pop %v1086
      %v1088 = vmul.f32 %v1058, 1.442695
      %v1089 = vpow.pop %v1088
      %v1090 = vmul.f32 %v1059, 1.442695
      %v1091 = vpow.pop %v1090
      %v1092 = vmul.f32 %v1061, %v1061
      %v1093 = vmul.f32 %v1063, %v1063
      %v1094 = vmul.f32 %v1065, %v1065
      %v1095 = vmul.f32 %v1067, %v1067
      %v1096 = vmul.f32 %v1069, %v1069
      %v1097 = vmul.f32 %v1071, %v1071
      %v1098 = vmul.f32 %v1073, %v1073
      %v1099 = vmul.f32 %v1075, %v1075
      %v1100 = vmul.f32 %v1077, %v1077
      %v1101 = vmul.f32 %v1079, %v1079
      %v1102 = vmul.f32 %v1081, %v1081
      %v1103 = vmul.f32 %v1083, %v1083
      %v1104 = vmul.f32 %v1085, %v1085
      %v1105 = vmul.f32 %v1087, %v1087
      %v1106 = vmul.f32 %v1089, %v1089
      %v1107 = vmul.f32 %v1091, %v1091
      %v1108 = vmul.f32 %v1092, %v1061
      %v1109 = vmul.f32 %v1093, %v1063
      %v1110 = vmul.f32 %v1094, %v1065
      %v1111 = vmul.f32 %v1095, %v1067
      %v1112 = vmul.f32 %v1096, %v1069
      %v1113 = vmul.f32 %v1097, %v1071
      %v1114 = vmul.f32 %v1098, %v1073
      %v1115 = vmul.f32 %v1099, %v1075
      %v1116 = vmul.f32 %v1100, %v1077
      %v1117 = vmul.f32 %v1101, %v1079
      %v1118 = vmul.f32 %v1102, %v1081
      %v1119 = vmul.f32 %v1103, %v1083
      %v1120 = vmul.f32 %v1104, %v1085
      %v1121 = vmul.f32 %v1105, %v1087
      %v1122 = vmul.f32 %v1106, %v1089
      %v1123 = vmul.f32 %v1107, %v1091
      %v1124 = vmul.f32 %v1092, %v1092
      %v1125 = vmul.f32 %v1093, %v1093
      %v1126 = vmul.f32 %v1094, %v1094
      %v1127 = vmul.f32 %v1095, %v1095
      %v1128 = vmul.f32 %v1096, %v1096
      %v1129 = vmul.f32 %v1097, %v1097
      %v1130 = vmul.f32 %v1098, %v1098
      %v1131 = vmul.f32 %v1099, %v1099
      %v1132 = vmul.f32 %v1100, %v1100
      %v1133 = vmul.f32 %v1101, %v1101
      %v1134 = vmul.f32 %v1102, %v1102
      %v1135 = vmul.f32 %v1103, %v1103
      %v1136 = vmul.f32 %v1104, %v1104
      %v1137 = vmul.f32 %v1105, %v1105
      %v1138 = vmul.f32 %v1106, %v1106
      %v1139 = vmul.f32 %v1107, %v1107
      %v1140 = vmul.f32 %v1108, %v1108
      %v1141 = vmul.f32 %v1109, %v1109
      %v1142 = vmul.f32 %v1110, %v1110
      %v1143 = vmul.f32 %v1111, %v1111
      %v1144 = vmul.f32 %v1112, %v1112
      %v1145 = vmul.f32 %v1113, %v1113
      %v1146 = vmul.f32 %v1114, %v1114
      %v1147 = vmul.f32 %v1115, %v1115
      %v1148 = vmul.f32 %v1116, %v1116
      %v1149 = vmul.f32 %v1117, %v1117
      %v1150 = vmul.f32 %v1118, %v1118
      %v1151 = vmul.f32 %v1119, %v1119
      %v1152 = vmul.f32 %v1120, %v1120
      %v1153 = vmul.f32 %v1121, %v1121
      %v1154 = vmul.f32 %v1122, %v1122
      %v1155 = vmul.f32 %v1123, %v1123
      %v1156 = vmul.f32 %v1140, %v1140
      %v1157 = vmul.f32 %v1141, %v1141
      %v1158 = vmul.f32 %v1142, %v1142
      %v1159 = vmul.f32 %v1143, %v1143
      %v1160 = vmul.f32 %v1144, %v1144
      %v1161 = vmul.f32 %v1145, %v1145
      %v1162 = vmul.f32 %v1146, %v1146
      %v1163 = vmul.f32 %v1147, %v1147
      %v1164 = vmul.f32 %v1148, %v1148
      %v1165 = vmul.f32 %v1149, %v1149
      %v1166 = vmul.f32 %v1150, %v1150
      %v1167 = vmul.f32 %v1151, %v1151
      %v1168 = vmul.f32 %v1152, %v1152
      %v1169 = vmul.f32 %v1153, %v1153
      %v1170 = vmul.f32 %v1154, %v1154
      %v1171 = vmul.f32 %v1155, %v1155
      %v1172 = vmul.f32 %v1156, %v1156
      %v1173 = vmul.f32 %v1157, %v1157
      %v1174 = vmul.f32 %v1158, %v1158
      %v1175 = vmul.f32 %v1159, %v1159
      %v1176 = vmul.f32 %v1160, %v1160
      %v1177 = vmul.f32 %v1161, %v1161
      %v1178 = vmul.f32 %v1162, %v1162
      %v1179 = vmul.f32 %v1163, %v1163
      %v1180 = vmul.f32 %v1164, %v1164
      %v1181 = vmul.f32 %v1165, %v1165
      %v1182 = vmul.f32 %v1166, %v1166
      %v1183 = vmul.f32 %v1167, %v1167
      %v1184 = vmul.f32 %v1168, %v1168
      %v1185 = vmul.f32 %v1169, %v1169
      %v1186 = vmul.f32 %v1170, %v1170
      %v1187 = vmul.f32 %v1171, %v1171
      %v1188 = vmul.f32 %v1172, %v1172
      %v1189 = vmul.f32 %v1173, %v1173
      %v1190 = vmul.f32 %v1174, %v1174
      %v1191 = vmul.f32 %v1175, %v1175
      %v1192 = vmul.f32 %v1176, %v1176
      %v1193 = vmul.f32 %v1177, %v1177
      %v1194 = vmul.f32 %v1178, %v1178
      %v1195 = vmul.f32 %v1179, %v1179
      %v1196 = vmul.f32 %v1180, %v1180
      %v1197 = vmul.f32 %v1181, %v1181
      %v1198 = vmul.f32 %v1182, %v1182
      %v1199 = vmul.f32 %v1183, %v1183
      %v1200 = vmul.f32 %v1184, %v1184
      %v1201 = vmul.f32 %v1185, %v1185
      %v1202 = vmul.f32 %v1186, %v1186
      %v1203 = vmul.f32 %v1187, %v1187
      %v1204 = vmul.f32 %v1188, %v1156
      %v1205 = vmul.f32 %v1189, %v1157
      %v1206 = vmul.f32 %v1190, %v1158
      %v1207 = vmul.f32 %v1191, %v1159
      %v1208 = vmul.f32 %v1192, %v1160
      %v1209 = vmul.f32 %v1193, %v1161
      %v1210 = vmul.f32 %v1194, %v1162
      %v1211 = vmul.f32 %v1195, %v1163
      %v1212 = vmul.f32 %v1196, %v1164
      %v1213 = vmul.f32 %v1197, %v1165
      %v1214 = vmul.f32 %v1198, %v1166
      %v1215 = vmul.f32 %v1199, %v1167
      %v1216 = vmul.f32 %v1200, %v1168
      %v1217 = vmul.f32 %v1201, %v1169
      %v1218 = vmul.f32 %v1202, %v1170
      %v1219 = vmul.f32 %v1203, %v1171
      %v1220 = vadd.f32 %v1108, %v1124
      %v1221 = vadd.f32 %v1109, %v1125
      %v1222 = vadd.f32 %v1110, %v1126
      %v1223 = vadd.f32 %v1111, %v1127
      %v1224 = vadd.f32 %v1112, %v1128
      %v1225 = vadd.f32 %v1113, %v1129
      %v1226 = vadd.f32 %v1114, %v1130
      %v1227 = vadd.f32 %v1115, %v1131
      %v1228 = vadd.f32 %v1116, %v1132
      %v1229 = vadd.f32 %v1117, %v1133
      %v1230 = vadd.f32 %v1118, %v1134
      %v1231 = vadd.f32 %v1119, %v1135
      %v1232 = vadd.f32 %v1120, %v1136
      %v1233 = vadd.f32 %v1121, %v1137
      %v1234 = vadd.f32 %v1122, %v1138
      %v1235 = vadd.f32 %v1123, %v1139
      %v1236 = vadd.f32 %v1220, %v1140
      %v1237 = vadd.f32 %v1221, %v1141
      %v1238 = vadd.f32 %v1222, %v1142
      %v1239 = vadd.f32 %v1223, %v1143
      %v1240 = vadd.f32 %v1224, %v1144
      %v1241 = vadd.f32 %v1225, %v1145
      %v1242 = vadd.f32 %v1226, %v1146
      %v1243 = vadd.f32 %v1227, %v1147
      %v1244 = vadd.f32 %v1228, %v1148
      %v1245 = vadd.f32 %v1229, %v1149
      %v1246 = vadd.f32 %v1230, %v1150
      %v1247 = vadd.f32 %v1231, %v1151
      %v1248 = vadd.f32 %v1232, %v1152
      %v1249 = vadd.f32 %v1233, %v1153
      %v1250 = vadd.f32 %v1234, %v1154
      %v1251 = vadd.f32 %v1235, %v1155
      %v1252 = vadd.f32 %v1236, %v1156
      %v1253 = vadd.f32 %v1237, %v1157
      %v1254 = vadd.f32 %v1238, %v1158
      %v1255 = vadd.f32 %v1239, %v1159
      %v1256 = vadd.f32 %v1240, %v1160
      %v1257 = vadd.f32 %v1241, %v1161
      %v1258 = vadd.f32 %v1242, %v1162
      %v1259 = vadd.f32 %v1243, %v1163
      %v1260 = vadd.f32 %v1244, %v1164
      %v1261 = vadd.f32 %v1245, %v1165
      %v1262 = vadd.f32 %v1246, %v1166
      %v1263 = vadd.f32 %v1247, %v1167
      %v1264 = vadd.f32 %v1248, %v1168
      %v1265 = vadd.f32 %v1249, %v1169
      %v1266 = vadd.f32 %v1250, %v1170
      %v1267 = vadd.f32 %v1251, %v1171
      %v1268 = vadd.f32 %v1252, %v1204
      %v1269 = vadd.f32 %v1253, %v1205
      %v1270 = vadd.f32 %v1254, %v1206
      %v1271 = vadd.f32 %v1255, %v1207
      %v1272 = vadd.f32 %v1256, %v1208
      %v1273 = vadd.f32 %v1257, %v1209
      %v1274 = vadd.f32 %v1258, %v1210
      %v1275 = vadd.f32 %v1259, %v1211
      %v1276 = vadd.f32 %v1260, %v1212
      %v1277 = vadd.f32 %v1261, %v1213
      %v1278 = vadd.f32 %v1262, %v1214
      %v1279 = vadd.f32 %v1263, %v1215
      %v1280 = vadd.f32 %v1264, %v1216
      %v1281 = vadd.f32 %v1265, %v1217
      %v1282 = vadd.f32 %v1266, %v1218
      %v1283 = vadd.f32 %v1267, %v1219
      %s1284 = sld [smem:[#allocation4 + %s595]]
      %p1285 = scmp.eq.s32.totalorder %s1284, %s596
      %s1286 = sld [smem:[#allocation6 + %s595]]
      %p1287 = scmp.eq.s32.totalorder %s1286, 0
      %s1288 = scalar_select %p1285, 1.0, 2.0
      %s1289 = scalar_select %p1287, 0.0, %s1288
      %v1290 = vld [vmem:[#allocation2] sm:$0xff]
      %v1291 = vld [vmem:[#allocation2 + $0x8] sm:$0xff]
      %v1292 = vld [vmem:[#allocation2 + $0x10] sm:$0xff]
      %v1293 = vld [vmem:[#allocation2 + $0x18] sm:$0xff]
      %v1294 = vld [vmem:[#allocation2 + $0x20] sm:$0xff]
      %v1295 = vld [vmem:[#allocation2 + $0x28] sm:$0xff]
      %v1296 = vld [vmem:[#allocation2 + $0x30] sm:$0xff]
      %v1297 = vld [vmem:[#allocation2 + $0x38] sm:$0xff]
      %v1298 = vld [vmem:[#allocation2 + $0x40] sm:$0xff]
      %v1299 = vld [vmem:[#allocation2 + $0x48] sm:$0xff]
      %v1300 = vld [vmem:[#allocation2 + $0x50] sm:$0xff]
      %v1301 = vld [vmem:[#allocation2 + $0x58] sm:$0xff]
      %v1302 = vld [vmem:[#allocation2 + $0x60] sm:$0xff]
      %v1303 = vld [vmem:[#allocation2 + $0x68] sm:$0xff]
      %v1304 = vld [vmem:[#allocation2 + $0x70] sm:$0xff]
      %v1305 = vld [vmem:[#allocation2 + $0x78] sm:$0xff]
      %v1306 = vld [vmem:[%s556] sm:$0xff]
      %v1307 = vld [vmem:[%s556 + $0x8] sm:$0xff]
      %v1308 = vld [vmem:[%s556 + $0x10] sm:$0xff]
      %v1309 = vld [vmem:[%s556 + $0x18] sm:$0xff]
      %v1310 = vld [vmem:[%s556 + $0x20] sm:$0xff]
      %v1311 = vld [vmem:[%s556 + $0x28] sm:$0xff]
      %v1312 = vld [vmem:[%s556 + $0x30] sm:$0xff]
      %v1313 = vld [vmem:[%s556 + $0x38] sm:$0xff]
      %v1314 = vld [vmem:[%s556 + $0x40] sm:$0xff]
      %v1315 = vld [vmem:[%s556 + $0x48] sm:$0xff]
      %v1316 = vld [vmem:[%s556 + $0x50] sm:$0xff]
      %v1317 = vld [vmem:[%s556 + $0x58] sm:$0xff]
      %v1318 = vld [vmem:[%s556 + $0x60] sm:$0xff]
      %v1319 = vld [vmem:[%s556 + $0x68] sm:$0xff]
      %v1320 = vld [vmem:[%s556 + $0x70] sm:$0xff]
      %v1321 = vld [vmem:[%s556 + $0x78] sm:$0xff]
      %v1322 = vstv %s1289
      %v1323 = vmul.f32 %v1306, %v1322
      %v1324 = vmul.f32 %v1307, %v1322
      %v1325 = vmul.f32 %v1308, %v1322
      %v1326 = vmul.f32 %v1309, %v1322
      %v1327 = vmul.f32 %v1310, %v1322
      %v1328 = vmul.f32 %v1311, %v1322
      %v1329 = vmul.f32 %v1312, %v1322
      %v1330 = vmul.f32 %v1313, %v1322
      %v1331 = vmul.f32 %v1314, %v1322
      %v1332 = vmul.f32 %v1315, %v1322
      %v1333 = vmul.f32 %v1316, %v1322
      %v1334 = vmul.f32 %v1317, %v1322
      %v1335 = vmul.f32 %v1318, %v1322
      %v1336 = vmul.f32 %v1319, %v1322
      %v1337 = vmul.f32 %v1320, %v1322
      %v1338 = vmul.f32 %v1321, %v1322
      %1340 = vset.pattern.permute.xlu0 0
      %1341 = vperm.xlu0 %1340, %v1323
      %v1342 = vpop.permute.xlu0 %1341
      %1345 = vset.pattern.permute.xlu0 0
      %1346 = vperm.xlu0 %1345, %v1324
      %v1347 = vpop.permute.xlu0 %1346
      %1350 = vset.pattern.permute.xlu0 0
      %1351 = vperm.xlu0 %1350, %v1325
      %v1352 = vpop.permute.xlu0 %1351
      %1355 = vset.pattern.permute.xlu0 0
      %1356 = vperm.xlu0 %1355, %v1326
      %v1357 = vpop.permute.xlu0 %1356
      %1360 = vset.pattern.permute.xlu0 0
      %1361 = vperm.xlu0 %1360, %v1327
      %v1362 = vpop.permute.xlu0 %1361
      %1365 = vset.pattern.permute.xlu0 0
      %1366 = vperm.xlu0 %1365, %v1328
      %v1367 = vpop.permute.xlu0 %1366
      %1370 = vset.pattern.permute.xlu0 0
      %1371 = vperm.xlu0 %1370, %v1329
      %v1372 = vpop.permute.xlu0 %1371
      %1375 = vset.pattern.permute.xlu0 0
      %1376 = vperm.xlu0 %1375, %v1330
      %v1377 = vpop.permute.xlu0 %1376
      %1380 = vset.pattern.permute.xlu0 0
      %1381 = vperm.xlu0 %1380, %v1331
      %v1382 = vpop.permute.xlu0 %1381
      %1385 = vset.pattern.permute.xlu0 0
      %1386 = vperm.xlu0 %1385, %v1332
      %v1387 = vpop.permute.xlu0 %1386
      %1390 = vset.pattern.permute.xlu0 0
      %1391 = vperm.xlu0 %1390, %v1333
      %v1392 = vpop.permute.xlu0 %1391
      %1395 = vset.pattern.permute.xlu0 0
      %1396 = vperm.xlu0 %1395, %v1334
      %v1397 = vpop.permute.xlu0 %1396
      %1400 = vset.pattern.permute.xlu0 0
      %1401 = vperm.xlu0 %1400, %v1335
      %v1402 = vpop.permute.xlu0 %1401
      %1405 = vset.pattern.permute.xlu0 0
      %1406 = vperm.xlu0 %1405, %v1336
      %v1407 = vpop.permute.xlu0 %1406
      %1410 = vset.pattern.permute.xlu0 0
      %1411 = vperm.xlu0 %1410, %v1337
      %v1412 = vpop.permute.xlu0 %1411
      %1415 = vset.pattern.permute.xlu0 0
      %1416 = vperm.xlu0 %1415, %v1338
      %v1417 = vpop.permute.xlu0 %1416
      %v1420 = vlaneseq
      %v1421 = vshrl.u32 %v1420, 7
      %v1422 = vsub.s32 0, %v1421
      %v1423 = vrot.slane %v603, %v1422
      %v1425 = vmul.f32 %v1342, %v1423
      %v1426 = vmul.f32 %v1347, %v1423
      %v1427 = vmul.f32 %v1352, %v1423
      %v1428 = vmul.f32 %v1357, %v1423
      %v1429 = vmul.f32 %v1362, %v1423
      %v1430 = vmul.f32 %v1367, %v1423
      %v1431 = vmul.f32 %v1372, %v1423
      %v1432 = vmul.f32 %v1377, %v1423
      %v1433 = vmul.f32 %v1382, %v1423
      %v1434 = vmul.f32 %v1387, %v1423
      %v1435 = vmul.f32 %v1392, %v1423
      %v1436 = vmul.f32 %v1397, %v1423
      %v1437 = vmul.f32 %v1402, %v1423
      %v1438 = vmul.f32 %v1407, %v1423
      %v1439 = vmul.f32 %v1412, %v1423
      %v1440 = vmul.f32 %v1417, %v1423
      %v1441 = vmul.f32 %v1268, %v1425
      %v1442 = vmul.f32 %v1269, %v1426
      %v1443 = vmul.f32 %v1270, %v1427
      %v1444 = vmul.f32 %v1271, %v1428
      %v1445 = vmul.f32 %v1272, %v1429
      %v1446 = vmul.f32 %v1273, %v1430
      %v1447 = vmul.f32 %v1274, %v1431
      %v1448 = vmul.f32 %v1275, %v1432
      %v1449 = vmul.f32 %v1276, %v1433
      %v1450 = vmul.f32 %v1277, %v1434
      %v1451 = vmul.f32 %v1278, %v1435
      %v1452 = vmul.f32 %v1279, %v1436
      %v1453 = vmul.f32 %v1280, %v1437
      %v1454 = vmul.f32 %v1281, %v1438
      %v1455 = vmul.f32 %v1282, %v1439
      %v1456 = vmul.f32 %v1283, %v1440
      %v1457 = vadd.f32 %v1290, %v1441
      %v1458 = vadd.f32 %v1291, %v1442
      %v1459 = vadd.f32 %v1292, %v1443
      %v1460 = vadd.f32 %v1293, %v1444
      %v1461 = vadd.f32 %v1294, %v1445
      %v1462 = vadd.f32 %v1295, %v1446
      %v1463 = vadd.f32 %v1296, %v1447
      %v1464 = vadd.f32 %v1297, %v1448
      %v1465 = vadd.f32 %v1298, %v1449
      %v1466 = vadd.f32 %v1299, %v1450
      %v1467 = vadd.f32 %v1300, %v1451
      %v1468 = vadd.f32 %v1301, %v1452
      %v1469 = vadd.f32 %v1302, %v1453
      %v1470 = vadd.f32 %v1303, %v1454
      %v1471 = vadd.f32 %v1304, %v1455
      %v1472 = vadd.f32 %v1305, %v1456
      %1473 = vst [vmem:[#allocation2] sm:$0xff] %v1457
      %1474 = vst [vmem:[#allocation2 + $0x8] sm:$0xff] %v1458
      %1475 = vst [vmem:[#allocation2 + $0x10] sm:$0xff] %v1459
      %1476 = vst [vmem:[#allocation2 + $0x18] sm:$0xff] %v1460
      %1477 = vst [vmem:[#allocation2 + $0x20] sm:$0xff] %v1461
      %1478 = vst [vmem:[#allocation2 + $0x28] sm:$0xff] %v1462
      %1479 = vst [vmem:[#allocation2 + $0x30] sm:$0xff] %v1463
      %1480 = vst [vmem:[#allocation2 + $0x38] sm:$0xff] %v1464
      %1481 = vst [vmem:[#allocation2 + $0x40] sm:$0xff] %v1465
      %1482 = vst [vmem:[#allocation2 + $0x48] sm:$0xff] %v1466
      %1483 = vst [vmem:[#allocation2 + $0x50] sm:$0xff] %v1467
      %1484 = vst [vmem:[#allocation2 + $0x58] sm:$0xff] %v1468
      %1485 = vst [vmem:[#allocation2 + $0x60] sm:$0xff] %v1469
      %1486 = vst [vmem:[#allocation2 + $0x68] sm:$0xff] %v1470
      %1487 = vst [vmem:[#allocation2 + $0x70] sm:$0xff] %v1471
      %1488 = vst [vmem:[#allocation2 + $0x78] sm:$0xff] %v1472
      // Predicated region
      $region49: #{tpu_custom_call.1} parent=43 // pred_check
        %p1489 = pneg %p569
      $region50: #{tpu_custom_call.1} parent=43 // pred_check_branch
        %1491 = sbr.rel (%p1489) target = $region52
      $region51: #{tpu_custom_call.1} parent=43 // pred_region
        %v1492 = vld [vmem:[#allocation2] sm:$0xff]
        %v1493 = vld [vmem:[#allocation2 + $0x8] sm:$0xff]
        %v1494 = vld [vmem:[#allocation2 + $0x10] sm:$0xff]
        %v1495 = vld [vmem:[#allocation2 + $0x18] sm:$0xff]
        %v1496 = vld [vmem:[#allocation2 + $0x20] sm:$0xff]
        %v1497 = vld [vmem:[#allocation2 + $0x28] sm:$0xff]
        %v1498 = vld [vmem:[#allocation2 + $0x30] sm:$0xff]
        %v1499 = vld [vmem:[#allocation2 + $0x38] sm:$0xff]
        %v1500 = vld [vmem:[#allocation2 + $0x40] sm:$0xff]
        %v1501 = vld [vmem:[#allocation2 + $0x48] sm:$0xff]
        %v1502 = vld [vmem:[#allocation2 + $0x50] sm:$0xff]
        %v1503 = vld [vmem:[#allocation2 + $0x58] sm:$0xff]
        %v1504 = vld [vmem:[#allocation2 + $0x60] sm:$0xff]
        %v1505 = vld [vmem:[#allocation2 + $0x68] sm:$0xff]
        %v1506 = vld [vmem:[#allocation2 + $0x70] sm:$0xff]
        %v1507 = vld [vmem:[#allocation2 + $0x78] sm:$0xff]
        %v1508 = vadd.f32 %v1492, %v1493
        %v1509 = vadd.f32 %v1508, %v1494
        %v1510 = vadd.f32 %v1509, %v1495
        %v1511 = vadd.f32 %v1510, %v1496
        %v1512 = vadd.f32 %v1511, %v1497
        %v1513 = vadd.f32 %v1512, %v1498
        %v1514 = vadd.f32 %v1513, %v1499
        %v1515 = vadd.f32 %v1514, %v1500
        %v1516 = vadd.f32 %v1515, %v1501
        %v1517 = vadd.f32 %v1516, %v1502
        %v1518 = vadd.f32 %v1517, %v1503
        %v1519 = vadd.f32 %v1518, %v1504
        %v1520 = vadd.f32 %v1519, %v1505
        %v1521 = vadd.f32 %v1520, %v1506
        %v1522 = vadd.f32 %v1521, %v1507
        %1523 = vadd.xlane.f32.xlu0 %v1522
        %v1524 = vpop.xlane.xlu0 %1523
        %v1525 = vrot.slane %v1524, 4
        %v1526 = vadd.f32 %v1524, %v1525
        %v1527 = vrot.slane %v1526, 2
        %v1528 = vadd.f32 %v1526, %v1527
        %v1529 = vrot.slane %v1528, 1
        %v1530 = vadd.f32 %v1528, %v1529
        %s1531 = vtos %v1530
        %v1532 = vstv %s1531
        %vm1533 = vcmask 0
        %1534 = vst.msk [vmem:[%s568] sm:$0x1] %vm1533, %v1532
      $region52: #{tpu_custom_call.1} parent=43 // pred_fallthru
        _
      %p1535 = scmp.lt.s32.totalorder %s38, 1
      %s1536 = scalar_select %p1535, %s38, 1
      %s1537 = scalar_lea.vmem %s9, %s1536
      // Predicated region
      $region53: #{tpu_custom_call.1} parent=43 // pred_check
        %p1538 = pneg %p274
      $region54: #{tpu_custom_call.1} parent=43 // pred_check_branch
        %1540 = sbr.rel (%p1538) target = $region56
      $region55: #{tpu_custom_call.1} parent=43 // pred_region
        _
      $region56: #{tpu_custom_call.1} parent=43 // pred_fallthru
        _
    $region44: #{tpu_custom_call.1} parent=5 // pred_fallthru
      _
    %p1541 = scmp.le.s32.totalorder 2, %s29
    // Predicated region
    $region57: #{tpu_custom_call.1} parent=5 // pred_check
      %p1542 = pneg %p1541
    $region58: #{tpu_custom_call.1} parent=5 // pred_check_branch
      %1544 = sbr.rel (%p1542) target = $region60
    $region59: #{tpu_custom_call.1} parent=5 // pred_region
      %s1545 = ssub.s32 %s29, 2
      // Predicated region
      $region61: #{tpu_custom_call.1} parent=59 // pred_check
        %p1546 = pneg %p280
      $region62: #{tpu_custom_call.1} parent=59 // pred_check_branch
        %1548 = sbr.rel (%p1546) target = $region64
      $region63: #{tpu_custom_call.1} parent=59 // pred_region
        %p1549 = scmp.lt.s32.totalorder %s40, 1
        %s1550 = scalar_select %p1549, %s40, 1
        %s1551 = scalar_lea.vmem %s9, %s1550
      $region64: #{tpu_custom_call.1} parent=59 // pred_fallthru
        _
    $region60: #{tpu_custom_call.1} parent=5 // pred_fallthru
      _
  $region6: #{tpu_custom_call.1} parent=0 // loop_footer
    %s33 = sadd.s32 1, %s29
  $region7: #{tpu_custom_call.1} parent=0 // loop_footer_branch
    %28 = sbr.rel target = $region3
  $region8: #{tpu_custom_call.1} parent=0 // loop_exit
    _

</llo_original>
